<compile_context>
chip_gen: v5e
topology: v5e:2x2
jax: 0.10.0
libtpu: 0.0.40
codegen_flags: <defaults>
</compile_context>

<pallas_src>
import jax
import jax.numpy as jnp
from jax.experimental import pallas as pl
from jax.experimental.pallas import tpu as pltpu

EPS = 1e-5             # nn.BatchNorm1d default eps
MAX_TILE_ROWS = 8192   # upper cap on the batch tile
VMEM_BUDGET = 12 << 20  # stay well inside v5e's 16 MiB default scoped VMEM


# ----------------------------------------------------------------------------
# Kernel
# ----------------------------------------------------------------------------
def mlp_kernel(x_ref,
               w1, b1, w2, b2, w3, b3, w4, b4,
               o_ref):
    """Fused MLP forward for one batch tile; all (folded) params resident in VMEM."""

    def layer(h, w_ref, b_ref, relu=True):
        y = jnp.dot(h, w_ref[...], preferred_element_type=jnp.float32) + b_ref[...]
        return jnp.maximum(y, 0.0) if relu else y

    h = x_ref[...]
    h = layer(h, w1, b1)                   # input -> 64  (Linear+BN folded, ReLU)
    h = layer(h, w2, b2)                   # 64 -> 32
    h = layer(h, w3, b3)                   # 32 -> 16
    # Dropout(p=0.2): identity in eval mode (no-op here).
    logits = layer(h, w4, b4, relu=False)  # 16 -> out_dim (unpadded)
    o_ref[...] = jax.nn.sigmoid(logits).astype(o_ref.dtype)


# ----------------------------------------------------------------------------
# Wrapper
# ----------------------------------------------------------------------------
def fold_params(params):
    """One-time constant fold of BN(eval)+bias into the weights (all f32)."""
    (w1, b1, g1, bt1, rm1, rv1,
     w2, b2, g2, bt2, rm2, rv2,
     w3, b3, g3, bt3, rm3, rv3,
     w4, b4) = params

    def fold(w, b, g, bt, rm, rv):
        scale = g * jax.lax.rsqrt(rv + EPS)            # [1, cout]
        return w * scale, (b - rm) * scale + bt

    fw1, fb1 = fold(w1, b1, g1, bt1, rm1, rv1)
    fw2, fb2 = fold(w2, b2, g2, bt2, rm2, rv2)
    fw3, fb3 = fold(w3, b3, g3, bt3, rm3, rv3)
    return (fw1, fb1, fw2, fb2, fw3, fb3, w4, b4)


def _round_up(n, m):
    return ((n + m - 1) // m) * m


def _num_tensorcores():
    """TensorCores per JAX device (2 on megacore generations, else 1)."""
    try:
        kind = jax.devices()[0].device_kind.lower()
    except Exception:
        return 1
    return 2 if any(tag in kind for tag in ("v7", "v5p", "v4")) else 1


def _choose_tiling(batch, in_dim, out_dim, hidden=(64, 32, 16)):
    """Pick (tile_b, n_steps). Tiles are VMEM-budget sized; single step on
    1-TC chips whenever possible; even step counts preferred on 2-TC chips."""
    # Rough per-row VMEM cost (f32): double-buffered x + out + intermediates.
    row_bytes = 4 * (2 * in_dim + 2 * out_dim + sum(hidden))
    max_tile = min(MAX_TILE_ROWS, VMEM_BUDGET // row_bytes)
    max_tile = max(8, (max_tile // 8) * 8)

    if batch <= max_tile:
        return _round_up(batch, 8), 1      # one big tile, one grid step

    n_steps = pl.cdiv(batch, max_tile)
    if _num_tensorcores() >= 2 and n_steps % 2:
        n_steps += 1                        # no idle tail step on megacore
    tile_b = _round_up(pl.cdiv(batch, n_steps), 8)
    n_steps = pl.cdiv(batch, tile_b)
    return tile_b, n_steps


def mlp_forward(x, folded_params, *, tile_b=None):
    """x: [B, input_dim] f32.  folded_params: output of fold_params()."""
    B, in_dim = x.shape
    out_dim = folded_params[-1].shape[-1]

    if tile_b is None:
        tile_b, n_steps = _choose_tiling(B, in_dim, out_dim)
    else:
        tile_b = _round_up(tile_b, 8)
        n_steps = pl.cdiv(B, tile_b)

    padded_b = tile_b * n_steps
    if padded_b != B:
        x = jnp.pad(x, ((0, padded_b - B), (0, 0)))   # masked tail rows

    # Full-array blocks with a constant index_map: fetched once and kept
    # resident in VMEM across grid steps (block index never changes).
    # ndim is bound per-parameter (avoids the lambda late-binding bug).
    param_specs = [
        pl.BlockSpec(p.shape, lambda i, nd=p.ndim: (0,) * nd)
        for p in folded_params
    ]
    in_specs = [pl.BlockSpec((tile_b, in_dim), lambda i: (i, 0))] + param_specs
    # Unpadded output block: last dim equals the full array dim, so it is a
    # legal BlockSpec; the masked narrow store is cheap (vst slot has slack)
    # and avoids 32x HBM write amplification + a second slicing pass.
    out_specs = pl.BlockSpec((tile_b, out_dim), lambda i: (i, 0))

    out = pl.pallas_call(
        mlp_kernel,
        out_shape=jax.ShapeDtypeStruct((padded_b, out_dim), jnp.float32),
        grid_spec=pltpu.PrefetchScalarGridSpec(
            num_scalar_prefetch=0,
            grid=(n_steps,),
            in_specs=in_specs,
            out_specs=out_specs,
        ),
        compiler_params=pltpu.CompilerParams(
            dimension_semantics=("parallel",)),
    )(x, *folded_params)

    return out if padded_b == B else out[:B]


# ----------------------------------------------------------------------------
# Parameters + pure-JAX reference (unfused, f32) for verification
# ----------------------------------------------------------------------------
def init_params(key, input_shape, output_shape):
    """Deterministic synthetic parameters (PyTorch-like uniform init)."""
    dims = [(input_shape, 64), (64, 32), (32, 16), (16, output_shape)]
    params = []
    for li, (cin, cout) in enumerate(dims):
        key, kw, kb, kg, kbt, krm, krv = jax.random.split(key, 7)
        bound = 1.0 / jnp.sqrt(float(cin))
        w = jax.random.uniform(kw, (cin, cout), jnp.float32, -bound, bound)
        b = jax.random.uniform(kb, (1, cout), jnp.float32, -bound, bound)
        params += [w, b]
        if li < 3:  # first three layers are followed by BatchNorm1d
            gamma = 1.0 + 0.1 * jax.random.normal(kg, (1, cout), jnp.float32)
            beta = 0.1 * jax.random.normal(kbt, (1, cout), jnp.float32)
            r_mean = 0.1 * jax.random.normal(krm, (1, cout), jnp.float32)
            r_var = jnp.abs(1.0 + 0.1 * jax.random.normal(krv, (1, cout),
                                                          jnp.float32))
            params += [gamma, beta, r_mean, r_var]
    return tuple(params)


def mlp_reference(x, params):
    (w1, b1, g1, bt1, rm1, rv1,
     w2, b2, g2, bt2, rm2, rv2,
     w3, b3, g3, bt3, rm3, rv3,
     w4, b4) = params

    def layer(h, w, b, g, bt, rm, rv):
        y = h @ w + b
        y = (y - rm) / jnp.sqrt(rv + EPS) * g + bt
        return jnp.maximum(y, 0.0)

    h = layer(x, w1, b1, g1, bt1, rm1, rv1)
    h = layer(h, w2, b2, g2, bt2, rm2, rv2)
    h = layer(h, w3, b3, g3, bt3, rm3, rv3)
    return jax.nn.sigmoid(h @ w4 + b4)


if __name__ == "__main__":
    INPUT_SHAPE = 32    # input feature dim
    OUTPUT_SHAPE = 4    # output dim
    BATCH = 256         # fits one VMEM tile -> single grid step

    key = jax.random.PRNGKey(0)
    kx, kp = jax.random.split(key)
    x = jax.random.normal(kx, (BATCH, INPUT_SHAPE), jnp.float32)
    params = init_params(kp, INPUT_SHAPE, OUTPUT_SHAPE)
    folded = fold_params(params)

    ref = mlp_reference(x, params)
    out = jax.block_until_ready(mlp_forward(x, folded))
    assert out.shape == (BATCH, OUTPUT_SHAPE)
    assert jnp.allclose(out, ref, atol=1e-4, rtol=1e-4), (
        f"max abs err {jnp.max(jnp.abs(out - ref))}")

    # Awkward batch (8 * prime): exercises the pad-to-tile path.
    B2 = 136
    x2 = jax.random.normal(jax.random.PRNGKey(1), (B2, INPUT_SHAPE), jnp.float32)
    ref2 = mlp_reference(x2, params)
    out2 = jax.block_until_ready(mlp_forward(x2, folded))
    assert out2.shape == (B2, OUTPUT_SHAPE)
    assert jnp.allclose(out2, ref2, atol=1e-4, rtol=1e-4), (
        f"max abs err {jnp.max(jnp.abs(out2 - ref2))}")

    print("KERNEL_OK")
</pallas_src>

<mosaic_0001>
module attributes {stable_mosaic.version = 11 : i64} {
  func.func @mlp_kernel(%arg0: i32, %arg1: memref<256x32xf32, #tpu.memory_space<vmem>>, %arg2: memref<32x64xf32, #tpu.memory_space<vmem>>, %arg3: memref<1x64xf32, #tpu.memory_space<vmem>>, %arg4: memref<64x32xf32, #tpu.memory_space<vmem>>, %arg5: memref<1x32xf32, #tpu.memory_space<vmem>>, %arg6: memref<32x16xf32, #tpu.memory_space<vmem>>, %arg7: memref<1x16xf32, #tpu.memory_space<vmem>>, %arg8: memref<16x4xf32, #tpu.memory_space<vmem>>, %arg9: memref<1x4xf32, #tpu.memory_space<vmem>>, %arg10: memref<256x4xf32, #tpu.memory_space<vmem>>) attributes {dimension_semantics = [#tpu.dimension_semantics<parallel>], iteration_bounds = array<i64: 1>, scalar_prefetch = 0 : i64, scratch_operands = 0 : i64, tpu.core_type = #tpu.core_type<tc>, window_params = [{transform_indices = @transform_0, window_bounds = array<i64: 256, 32>}, {pipeline_mode = #tpu.pipeline_mode<synchronous>, transform_indices = @transform_1, window_bounds = array<i64: 32, 64>}, {pipeline_mode = #tpu.pipeline_mode<synchronous>, transform_indices = @transform_2, window_bounds = array<i64: 1, 64>}, {pipeline_mode = #tpu.pipeline_mode<synchronous>, transform_indices = @transform_3, window_bounds = array<i64: 64, 32>}, {pipeline_mode = #tpu.pipeline_mode<synchronous>, transform_indices = @transform_4, window_bounds = array<i64: 1, 32>}, {pipeline_mode = #tpu.pipeline_mode<synchronous>, transform_indices = @transform_5, window_bounds = array<i64: 32, 16>}, {pipeline_mode = #tpu.pipeline_mode<synchronous>, transform_indices = @transform_6, window_bounds = array<i64: 1, 16>}, {pipeline_mode = #tpu.pipeline_mode<synchronous>, transform_indices = @transform_7, window_bounds = array<i64: 16, 4>}, {pipeline_mode = #tpu.pipeline_mode<synchronous>, transform_indices = @transform_8, window_bounds = array<i64: 1, 4>}, {transform_indices = @transform_9, window_bounds = array<i64: 256, 4>}]} {
    %c0 = arith.constant 0 : index
    %c0_0 = arith.constant 0 : index
    %0 = vector.load %arg1[%c0, %c0_0] : memref<256x32xf32, #tpu.memory_space<vmem>>, vector<256x32xf32>
    %c0_1 = arith.constant 0 : index
    %c0_2 = arith.constant 0 : index
    %1 = vector.load %arg2[%c0_1, %c0_2] : memref<32x64xf32, #tpu.memory_space<vmem>>, vector<32x64xf32>
    %cst = arith.constant dense<0.000000e+00> : vector<256x64xf32>
    %2 = tpu.matmul %0, %1, %cst {dimension_numbers = #tpu.dot_dimension_numbers<[1], [0], [0], [1], [0, 0, 1, 1], [], []>} : vector<256x32xf32>, vector<32x64xf32>, vector<256x64xf32> -> vector<256x64xf32>
    %c0_3 = arith.constant 0 : index
    %c0_4 = arith.constant 0 : index
    %3 = vector.load %arg3[%c0_3, %c0_4] : memref<1x64xf32, #tpu.memory_space<vmem>>, vector<1x64xf32>
    %4 = vector.broadcast %3 : vector<1x64xf32> to vector<256x64xf32>
    %5 = arith.addf %2, %4 : vector<256x64xf32>
    %cst_5 = arith.constant 0.000000e+00 : f32
    %6 = vector.broadcast %cst_5 : f32 to vector<256x64xf32>
    %7 = arith.maximumf %5, %6 : vector<256x64xf32>
    %c0_6 = arith.constant 0 : index
    %c0_7 = arith.constant 0 : index
    %8 = vector.load %arg4[%c0_6, %c0_7] : memref<64x32xf32, #tpu.memory_space<vmem>>, vector<64x32xf32>
    %cst_8 = arith.constant dense<0.000000e+00> : vector<256x32xf32>
    %9 = tpu.matmul %7, %8, %cst_8 {dimension_numbers = #tpu.dot_dimension_numbers<[1], [0], [0], [1], [0, 0, 1, 1], [], []>} : vector<256x64xf32>, vector<64x32xf32>, vector<256x32xf32> -> vector<256x32xf32>
    %c0_9 = arith.constant 0 : index
    %c0_10 = arith.constant 0 : index
    %10 = vector.load %arg5[%c0_9, %c0_10] : memref<1x32xf32, #tpu.memory_space<vmem>>, vector<1x32xf32>
    %11 = vector.broadcast %10 : vector<1x32xf32> to vector<256x32xf32>
    %12 = arith.addf %9, %11 : vector<256x32xf32>
    %cst_11 = arith.constant 0.000000e+00 : f32
    %13 = vector.broadcast %cst_11 : f32 to vector<256x32xf32>
    %14 = arith.maximumf %12, %13 : vector<256x32xf32>
    %c0_12 = arith.constant 0 : index
    %c0_13 = arith.constant 0 : index
    %15 = vector.load %arg6[%c0_12, %c0_13] : memref<32x16xf32, #tpu.memory_space<vmem>>, vector<32x16xf32>
    %cst_14 = arith.constant dense<0.000000e+00> : vector<256x16xf32>
    %16 = tpu.matmul %14, %15, %cst_14 {dimension_numbers = #tpu.dot_dimension_numbers<[1], [0], [0], [1], [0, 0, 1, 1], [], []>} : vector<256x32xf32>, vector<32x16xf32>, vector<256x16xf32> -> vector<256x16xf32>
    %c0_15 = arith.constant 0 : index
    %c0_16 = arith.constant 0 : index
    %17 = vector.load %arg7[%c0_15, %c0_16] : memref<1x16xf32, #tpu.memory_space<vmem>>, vector<1x16xf32>
    %18 = vector.broadcast %17 : vector<1x16xf32> to vector<256x16xf32>
    %19 = arith.addf %16, %18 : vector<256x16xf32>
    %cst_17 = arith.constant 0.000000e+00 : f32
    %20 = vector.broadcast %cst_17 : f32 to vector<256x16xf32>
    %21 = arith.maximumf %19, %20 : vector<256x16xf32>
    %c0_18 = arith.constant 0 : index
    %c0_19 = arith.constant 0 : index
    %22 = vector.load %arg8[%c0_18, %c0_19] : memref<16x4xf32, #tpu.memory_space<vmem>>, vector<16x4xf32>
    %cst_20 = arith.constant dense<0.000000e+00> : vector<256x4xf32>
    %23 = tpu.matmul %21, %22, %cst_20 {dimension_numbers = #tpu.dot_dimension_numbers<[1], [0], [0], [1], [0, 0, 1, 1], [], []>} : vector<256x16xf32>, vector<16x4xf32>, vector<256x4xf32> -> vector<256x4xf32>
    %c0_21 = arith.constant 0 : index
    %c0_22 = arith.constant 0 : index
    %24 = vector.load %arg9[%c0_21, %c0_22] : memref<1x4xf32, #tpu.memory_space<vmem>>, vector<1x4xf32>
    %25 = vector.broadcast %24 : vector<1x4xf32> to vector<256x4xf32>
    %26 = arith.addf %23, %25 : vector<256x4xf32>
    %27 = arith.negf %26 : vector<256x4xf32>
    %28 = math.exp %27 : vector<256x4xf32>
    %cst_23 = arith.constant 1.000000e+00 : f32
    %29 = vector.broadcast %cst_23 : f32 to vector<256x4xf32>
    %30 = arith.addf %29, %28 : vector<256x4xf32>
    %31 = arith.divf %29, %30 : vector<256x4xf32>
    %c0_24 = arith.constant 0 : index
    %c0_25 = arith.constant 0 : index
    %32 = vector.load %arg10[%c0_24, %c0_25] : memref<256x4xf32, #tpu.memory_space<vmem>>, vector<256x4xf32>
    tpu.vector_store %arg10[%c0_24, %c0_25], %31 {strides = array<i32>} : memref<256x4xf32, #tpu.memory_space<vmem>>, vector<256x4xf32>,
    return
  }
  func.func @transform_0(%arg0: i32) -> (i32, i32) {
    %c0_i32 = arith.constant 0 : i32
    %c0_i32_0 = arith.constant 0 : i32
    return %arg0, %c0_i32 : i32, i32
  }
  func.func @transform_1(%arg0: i32) -> (i32, i32) {
    %c0_i32 = arith.constant 0 : i32
    %c0_i32_0 = arith.constant 0 : i32
    %c0_i32_1 = arith.constant 0 : i32
    return %c0_i32, %c0_i32_0 : i32, i32
  }
  func.func @transform_2(%arg0: i32) -> (i32, i32) {
    %c0_i32 = arith.constant 0 : i32
    %c0_i32_0 = arith.constant 0 : i32
    %c0_i32_1 = arith.constant 0 : i32
    return %c0_i32, %c0_i32_0 : i32, i32
  }
  func.func @transform_3(%arg0: i32) -> (i32, i32) {
    %c0_i32 = arith.constant 0 : i32
    %c0_i32_0 = arith.constant 0 : i32
    %c0_i32_1 = arith.constant 0 : i32
    return %c0_i32, %c0_i32_0 : i32, i32
  }
  func.func @transform_4(%arg0: i32) -> (i32, i32) {
    %c0_i32 = arith.constant 0 : i32
    %c0_i32_0 = arith.constant 0 : i32
    %c0_i32_1 = arith.constant 0 : i32
    return %c0_i32, %c0_i32_0 : i32, i32
  }
  func.func @transform_5(%arg0: i32) -> (i32, i32) {
    %c0_i32 = arith.constant 0 : i32
    %c0_i32_0 = arith.constant 0 : i32
    %c0_i32_1 = arith.constant 0 : i32
    return %c0_i32, %c0_i32_0 : i32, i32
  }
  func.func @transform_6(%arg0: i32) -> (i32, i32) {
    %c0_i32 = arith.constant 0 : i32
    %c0_i32_0 = arith.constant 0 : i32
    %c0_i32_1 = arith.constant 0 : i32
    return %c0_i32, %c0_i32_0 : i32, i32
  }
  func.func @transform_7(%arg0: i32) -> (i32, i32) {
    %c0_i32 = arith.constant 0 : i32
    %c0_i32_0 = arith.constant 0 : i32
    %c0_i32_1 = arith.constant 0 : i32
    return %c0_i32, %c0_i32_0 : i32, i32
  }
  func.func @transform_8(%arg0: i32) -> (i32, i32) {
    %c0_i32 = arith.constant 0 : i32
    %c0_i32_0 = arith.constant 0 : i32
    %c0_i32_1 = arith.constant 0 : i32
    return %c0_i32, %c0_i32_0 : i32, i32
  }
  func.func @transform_9(%arg0: i32) -> (i32, i32) {
    %c0_i32 = arith.constant 0 : i32
    %c0_i32_0 = arith.constant 0 : i32
    return %arg0, %c0_i32 : i32, i32
  }
}

</mosaic_0001>

<llo_original>
// kernel: tpu_custom_call.1
$region0: #{tpu_custom_call.1}
  #allocation0 [shape = 'u32[]', space=smem, size = 0x4, offset = 0x4, fixed_abs, tag = 'smem constant byte address 0x4 - core index']
  #allocation1 [shape = 'u32[72,128]{1,0:T(1,128)}', space=vmem, size = 0x9000, scoped, tag = 'internal scratch']
  %s0 = inlined_call_operand.vmem [shape: f32[256,32], index: 0, kind: input, shape index: {}]
  %s1 = inlined_call_operand.vmem [shape: f32[32,64], index: 1, kind: input, shape index: {}]
  %s2 = inlined_call_operand.vmem [shape: f32[1,64], index: 2, kind: input, shape index: {}]
  %s3 = inlined_call_operand.vmem [shape: f32[64,32], index: 3, kind: input, shape index: {}]
  %s4 = inlined_call_operand.vmem [shape: f32[1,32], index: 4, kind: input, shape index: {}]
  %s5 = inlined_call_operand.vmem [shape: f32[32,16], index: 5, kind: input, shape index: {}]
  %s6 = inlined_call_operand.vmem [shape: f32[1,16], index: 6, kind: input, shape index: {}]
  %s7 = inlined_call_operand.vmem [shape: f32[16,4], index: 7, kind: input, shape index: {}]
  %s8 = inlined_call_operand.vmem [shape: f32[1,4], index: 8, kind: input, shape index: {}]
  %s9 = inlined_call_operand.vmem [shape: f32[256,4], index: 9, kind: output, shape index: {}]
  %s10 = sld [smem:[#allocation0]]
  $region46: #{tpu_custom_call.1} parent=0
    _
  %s12 = ssub.s32 1, %s10
  %s13 = scalar_select 0, %s12, %s10
  // Predicated region
  $region2: #{tpu_custom_call.1} parent=0 // pred_check
    _
  $region3: #{tpu_custom_call.1} parent=0 // pred_check_branch
    %15 = sbr.rel (0) target = $region5
  $region4: #{tpu_custom_call.1} parent=0 // pred_region
    _
  $region5: #{tpu_custom_call.1} parent=0 // pred_fallthru
    _
  // Predicated region
  $region6: #{tpu_custom_call.1} parent=0 // pred_check
    _
  $region7: #{tpu_custom_call.1} parent=0 // pred_check_branch
    %17 = sbr.rel (0) target = $region9
  $region8: #{tpu_custom_call.1} parent=0 // pred_region
    _
  $region9: #{tpu_custom_call.1} parent=0 // pred_fallthru
    _
  // Predicated region
  $region10: #{tpu_custom_call.1} parent=0 // pred_check
    _
  $region11: #{tpu_custom_call.1} parent=0 // pred_check_branch
    %19 = sbr.rel (0) target = $region13
  $region12: #{tpu_custom_call.1} parent=0 // pred_region
    _
  $region13: #{tpu_custom_call.1} parent=0 // pred_fallthru
    _
  // Predicated region
  $region14: #{tpu_custom_call.1} parent=0 // pred_check
    _
  $region15: #{tpu_custom_call.1} parent=0 // pred_check_branch
    %21 = sbr.rel (0) target = $region17
  $region16: #{tpu_custom_call.1} parent=0 // pred_region
    _
  $region17: #{tpu_custom_call.1} parent=0 // pred_fallthru
    _
  // Predicated region
  $region18: #{tpu_custom_call.1} parent=0 // pred_check
    _
  $region19: #{tpu_custom_call.1} parent=0 // pred_check_branch
    %23 = sbr.rel (0) target = $region21
  $region20: #{tpu_custom_call.1} parent=0 // pred_region
    _
  $region21: #{tpu_custom_call.1} parent=0 // pred_fallthru
    _
  // Predicated region
  $region22: #{tpu_custom_call.1} parent=0 // pred_check
    _
  $region23: #{tpu_custom_call.1} parent=0 // pred_check_branch
    %25 = sbr.rel (0) target = $region25
  $region24: #{tpu_custom_call.1} parent=0 // pred_region
    _
  $region25: #{tpu_custom_call.1} parent=0 // pred_fallthru
    _
  // Predicated region
  $region26: #{tpu_custom_call.1} parent=0 // pred_check
    _
  $region27: #{tpu_custom_call.1} parent=0 // pred_check_branch
    %27 = sbr.rel (0) target = $region29
  $region28: #{tpu_custom_call.1} parent=0 // pred_region
    _
  $region29: #{tpu_custom_call.1} parent=0 // pred_fallthru
    _
  // Predicated region
  $region30: #{tpu_custom_call.1} parent=0 // pred_check
    _
  $region31: #{tpu_custom_call.1} parent=0 // pred_check_branch
    %29 = sbr.rel (0) target = $region33
  $region32: #{tpu_custom_call.1} parent=0 // pred_region
    _
  $region33: #{tpu_custom_call.1} parent=0 // pred_fallthru
    _
  // Predicated region
  $region34: #{tpu_custom_call.1} parent=0 // pred_check
    _
  $region35: #{tpu_custom_call.1} parent=0 // pred_check_branch
    %31 = sbr.rel (0) target = $region37
  $region36: #{tpu_custom_call.1} parent=0 // pred_region
    _
  $region37: #{tpu_custom_call.1} parent=0 // pred_fallthru
    _
  %v32 = vld [vmem:[%s0] sm:$0xff]
  %v33 = vld [vmem:[%s0 + $0x8] sm:$0xff]
  %v34 = vld [vmem:[%s0 + $0x10] sm:$0xff]
  %v35 = vld [vmem:[%s0 + $0x18] sm:$0xff]
  %v36 = vld [vmem:[%s0 + $0x20] sm:$0xff]
  %v37 = vld [vmem:[%s0 + $0x28] sm:$0xff]
  %v38 = vld [vmem:[%s0 + $0x30] sm:$0xff]
  %v39 = vld [vmem:[%s0 + $0x38] sm:$0xff]
  %v40 = vld [vmem:[%s0 + $0x40] sm:$0xff]
  %v41 = vld [vmem:[%s0 + $0x48] sm:$0xff]
  %v42 = vld [vmem:[%s0 + $0x50] sm:$0xff]
  %v43 = vld [vmem:[%s0 + $0x58] sm:$0xff]
  %v44 = vld [vmem:[%s0 + $0x60] sm:$0xff]
  %v45 = vld [vmem:[%s0 + $0x68] sm:$0xff]
  %v46 = vld [vmem:[%s0 + $0x70] sm:$0xff]
  %v47 = vld [vmem:[%s0 + $0x78] sm:$0xff]
  %v48 = vld [vmem:[%s0 + $0x80] sm:$0xff]
  %v49 = vld [vmem:[%s0 + $0x88] sm:$0xff]
  %v50 = vld [vmem:[%s0 + $0x90] sm:$0xff]
  %v51 = vld [vmem:[%s0 + $0x98] sm:$0xff]
  %v52 = vld [vmem:[%s0 + $0xa0] sm:$0xff]
  %v53 = vld [vmem:[%s0 + $0xa8] sm:$0xff]
  %v54 = vld [vmem:[%s0 + $0xb0] sm:$0xff]
  %v55 = vld [vmem:[%s0 + $0xb8] sm:$0xff]
  %v56 = vld [vmem:[%s0 + $0xc0] sm:$0xff]
  %v57 = vld [vmem:[%s0 + $0xc8] sm:$0xff]
  %v58 = vld [vmem:[%s0 + $0xd0] sm:$0xff]
  %v59 = vld [vmem:[%s0 + $0xd8] sm:$0xff]
  %v60 = vld [vmem:[%s0 + $0xe0] sm:$0xff]
  %v61 = vld [vmem:[%s0 + $0xe8] sm:$0xff]
  %v62 = vld [vmem:[%s0 + $0xf0] sm:$0xff]
  %v63 = vld [vmem:[%s0 + $0xf8] sm:$0xff]
  %v64 = vld [vmem:[%s1] sm:$0xff]
  %v65 = vld [vmem:[%s1 + $0x8] sm:$0xff]
  %v66 = vld [vmem:[%s1 + $0x10] sm:$0xff]
  %v67 = vld [vmem:[%s1 + $0x18] sm:$0xff]
  %v68 = vld [vmem:[%s2] sm:$0x1]
  %v70 = vperm.slane %v68, 0
  %vm72 = vcmask 261120
  %v74 = vsel %vm72, %v32, 0
  %v77 = vsel %vm72, %v33, 0
  %v80 = vsel %vm72, %v34, 0
  %v83 = vsel %vm72, %v35, 0
  %v86 = vsel %vm72, %v36, 0
  %v89 = vsel %vm72, %v37, 0
  %v92 = vsel %vm72, %v38, 0
  %v95 = vsel %vm72, %v39, 0
  %v98 = vsel %vm72, %v40, 0
  %v101 = vsel %vm72, %v41, 0
  %v104 = vsel %vm72, %v42, 0
  %v107 = vsel %vm72, %v43, 0
  %v110 = vsel %vm72, %v44, 0
  %v113 = vsel %vm72, %v45, 0
  %v116 = vsel %vm72, %v46, 0
  %v119 = vsel %vm72, %v47, 0
  %v122 = vsel %vm72, %v48, 0
  %v125 = vsel %vm72, %v49, 0
  %v128 = vsel %vm72, %v50, 0
  %v131 = vsel %vm72, %v51, 0
  %v134 = vsel %vm72, %v52, 0
  %v137 = vsel %vm72, %v53, 0
  %v140 = vsel %vm72, %v54, 0
  %v143 = vsel %vm72, %v55, 0
  %v146 = vsel %vm72, %v56, 0
  %v149 = vsel %vm72, %v57, 0
  %v152 = vsel %vm72, %v58, 0
  %v155 = vsel %vm72, %v59, 0
  %v158 = vsel %vm72, %v60, 0
  %v161 = vsel %vm72, %v61, 0
  %v164 = vsel %vm72, %v62, 0
  %v167 = vsel %vm72, %v63, 0
  %169 = vmatpush.msra.mxu0 0.0
  %170 = vmatpush.msra.mxu0 0.0
  %171 = vmatpush.msra.mxu0 0.0
  %172 = vmatpush.msra.mxu0 0.0
  %173 = vmatpush.msra.mxu0 0.0
  %174 = vmatpush.msra.mxu0 0.0
  %175 = vmatpush.msra.mxu0 0.0
  %176 = vmatpush.msra.mxu0 0.0
  %177 = vmatpush.msra.mxu0 0.0
  %178 = vmatpush.msra.mxu0 0.0
  %179 = vmatpush.msra.mxu0 0.0
  %180 = vmatpush.msra.mxu0 0.0
  %181 = vmatpush.msra.mxu0 %v67
  %182 = vmatpush.msra.mxu0 %v66
  %183 = vmatpush.msra.mxu0 %v65
  %184 = vmatpush.msra.mxu0 %v64
  %185 = vmatmul.f32.gmra.mxu0 %v74
  %v186 = vpop.f32.mrf.mxu0
  %v187 = vadd.f32 %v70, %v186
  %188 = vmatmul.f32.gmra.mxu0 %v77
  %v189 = vpop.f32.mrf.mxu0
  %v190 = vadd.f32 %v70, %v189
  %191 = vmatmul.f32.gmra.mxu0 %v80
  %v192 = vpop.f32.mrf.mxu0
  %v193 = vadd.f32 %v70, %v192
  %194 = vmatmul.f32.gmra.mxu0 %v83
  %v195 = vpop.f32.mrf.mxu0
  %v196 = vadd.f32 %v70, %v195
  %197 = vmatmul.f32.gmra.mxu0 %v86
  %v198 = vpop.f32.mrf.mxu0
  %v199 = vadd.f32 %v70, %v198
  %200 = vmatmul.f32.gmra.mxu0 %v89
  %v201 = vpop.f32.mrf.mxu0
  %v202 = vadd.f32 %v70, %v201
  %203 = vmatmul.f32.gmra.mxu0 %v92
  %v204 = vpop.f32.mrf.mxu0
  %v205 = vadd.f32 %v70, %v204
  %206 = vmatmul.f32.gmra.mxu0 %v95
  %v207 = vpop.f32.mrf.mxu0
  %v208 = vadd.f32 %v70, %v207
  %209 = vmatmul.f32.gmra.mxu0 %v98
  %v210 = vpop.f32.mrf.mxu0
  %v211 = vadd.f32 %v70, %v210
  %212 = vmatmul.f32.gmra.mxu0 %v101
  %v213 = vpop.f32.mrf.mxu0
  %v214 = vadd.f32 %v70, %v213
  %215 = vmatmul.f32.gmra.mxu0 %v104
  %v216 = vpop.f32.mrf.mxu0
  %v217 = vadd.f32 %v70, %v216
  %218 = vmatmul.f32.gmra.mxu0 %v107
  %v219 = vpop.f32.mrf.mxu0
  %v220 = vadd.f32 %v70, %v219
  %221 = vmatmul.f32.gmra.mxu0 %v110
  %v222 = vpop.f32.mrf.mxu0
  %v223 = vadd.f32 %v70, %v222
  %224 = vmatmul.f32.gmra.mxu0 %v113
  %v225 = vpop.f32.mrf.mxu0
  %v226 = vadd.f32 %v70, %v225
  %227 = vmatmul.f32.gmra.mxu0 %v116
  %v228 = vpop.f32.mrf.mxu0
  %v229 = vadd.f32 %v70, %v228
  %230 = vmatmul.f32.gmra.mxu0 %v119
  %v231 = vpop.f32.mrf.mxu0
  %v232 = vadd.f32 %v70, %v231
  %233 = vmatmul.f32.gmra.mxu0 %v122
  %v234 = vpop.f32.mrf.mxu0
  %v235 = vadd.f32 %v70, %v234
  %236 = vmatmul.f32.gmra.mxu0 %v125
  %v237 = vpop.f32.mrf.mxu0
  %v238 = vadd.f32 %v70, %v237
  %239 = vmatmul.f32.gmra.mxu0 %v128
  %v240 = vpop.f32.mrf.mxu0
  %v241 = vadd.f32 %v70, %v240
  %242 = vmatmul.f32.gmra.mxu0 %v131
  %v243 = vpop.f32.mrf.mxu0
  %v244 = vadd.f32 %v70, %v243
  %245 = vmatmul.f32.gmra.mxu0 %v134
  %v246 = vpop.f32.mrf.mxu0
  %v247 = vadd.f32 %v70, %v246
  %248 = vmatmul.f32.gmra.mxu0 %v137
  %v249 = vpop.f32.mrf.mxu0
  %v250 = vadd.f32 %v70, %v249
  %251 = vmatmul.f32.gmra.mxu0 %v140
  %v252 = vpop.f32.mrf.mxu0
  %v253 = vadd.f32 %v70, %v252
  %254 = vmatmul.f32.gmra.mxu0 %v143
  %v255 = vpop.f32.mrf.mxu0
  %v256 = vadd.f32 %v70, %v255
  %257 = vmatmul.f32.gmra.mxu0 %v146
  %v258 = vpop.f32.mrf.mxu0
  %v259 = vadd.f32 %v70, %v258
  %260 = vmatmul.f32.gmra.mxu0 %v149
  %v261 = vpop.f32.mrf.mxu0
  %v262 = vadd.f32 %v70, %v261
  %263 = vmatmul.f32.gmra.mxu0 %v152
  %v264 = vpop.f32.mrf.mxu0
  %v265 = vadd.f32 %v70, %v264
  %266 = vmatmul.f32.gmra.mxu0 %v155
  %v267 = vpop.f32.mrf.mxu0
  %v268 = vadd.f32 %v70, %v267
  %269 = vmatmul.f32.gmra.mxu0 %v158
  %v270 = vpop.f32.mrf.mxu0
  %v271 = vadd.f32 %v70, %v270
  %272 = vmatmul.f32.gmra.mxu0 %v161
  %v273 = vpop.f32.mrf.mxu0
  %v274 = vadd.f32 %v70, %v273
  %275 = vmatmul.f32.gmra.mxu0 %v164
  %v276 = vpop.f32.mrf.mxu0
  %v277 = vadd.f32 %v70, %v276
  %278 = vmatmul.f32.gmra.mxu0 %v167
  %v279 = vpop.f32.mrf.mxu0
  %v280 = vadd.f32 %v70, %v279
  %281 = vdwg.mxu0
  %v282 = vmax.f32 %v187, 0.0
  %v283 = vmax.f32 %v190, 0.0
  %v284 = vmax.f32 %v193, 0.0
  %v285 = vmax.f32 %v196, 0.0
  %v286 = vmax.f32 %v199, 0.0
  %v287 = vmax.f32 %v202, 0.0
  %v288 = vmax.f32 %v205, 0.0
  %v289 = vmax.f32 %v208, 0.0
  %v290 = vmax.f32 %v211, 0.0
  %v291 = vmax.f32 %v214, 0.0
  %v292 = vmax.f32 %v217, 0.0
  %v293 = vmax.f32 %v220, 0.0
  %v294 = vmax.f32 %v223, 0.0
  %v295 = vmax.f32 %v226, 0.0
  %v296 = vmax.f32 %v229, 0.0
  %v297 = vmax.f32 %v232, 0.0
  %v298 = vmax.f32 %v235, 0.0
  %v299 = vmax.f32 %v238, 0.0
  %v300 = vmax.f32 %v241, 0.0
  %v301 = vmax.f32 %v244, 0.0
  %v302 = vmax.f32 %v247, 0.0
  %v303 = vmax.f32 %v250, 0.0
  %v304 = vmax.f32 %v253, 0.0
  %v305 = vmax.f32 %v256, 0.0
  %v306 = vmax.f32 %v259, 0.0
  %v307 = vmax.f32 %v262, 0.0
  %v308 = vmax.f32 %v265, 0.0
  %v309 = vmax.f32 %v268, 0.0
  %v310 = vmax.f32 %v271, 0.0
  %v311 = vmax.f32 %v274, 0.0
  %v312 = vmax.f32 %v277, 0.0
  %v313 = vmax.f32 %v280, 0.0
  %v314 = vld [vmem:[%s3] sm:$0xff]
  %v315 = vld [vmem:[%s3 + $0x8] sm:$0xff]
  %v316 = vld [vmem:[%s3 + $0x10] sm:$0xff]
  %v317 = vld [vmem:[%s3 + $0x18] sm:$0xff]
  %v318 = vld [vmem:[%s3 + $0x20] sm:$0xff]
  %v319 = vld [vmem:[%s3 + $0x28] sm:$0xff]
  %v320 = vld [vmem:[%s3 + $0x30] sm:$0xff]
  %v321 = vld [vmem:[%s3 + $0x38] sm:$0xff]
  %v322 = vld [vmem:[%s4] sm:$0x1]
  %v324 = vperm.slane %v322, 0
  %vm326 = vcmask 523264
  %v328 = vsel %vm326, %v282, 0
  %v331 = vsel %vm326, %v283, 0
  %v334 = vsel %vm326, %v284, 0
  %v337 = vsel %vm326, %v285, 0
  %v340 = vsel %vm326, %v286, 0
  %v343 = vsel %vm326, %v287, 0
  %v346 = vsel %vm326, %v288, 0
  %v349 = vsel %vm326, %v289, 0
  %v352 = vsel %vm326, %v290, 0
  %v355 = vsel %vm326, %v291, 0
  %v358 = vsel %vm326, %v292, 0
  %v361 = vsel %vm326, %v293, 0
  %v364 = vsel %vm326, %v294, 0
  %v367 = vsel %vm326, %v295, 0
  %v370 = vsel %vm326, %v296, 0
  %v373 = vsel %vm326, %v297, 0
  %v376 = vsel %vm326, %v298, 0
  %v379 = vsel %vm326, %v299, 0
  %v382 = vsel %vm326, %v300, 0
  %v385 = vsel %vm326, %v301, 0
  %v388 = vsel %vm326, %v302, 0
  %v391 = vsel %vm326, %v303, 0
  %v394 = vsel %vm326, %v304, 0
  %v397 = vsel %vm326, %v305, 0
  %v400 = vsel %vm326, %v306, 0
  %v403 = vsel %vm326, %v307, 0
  %v406 = vsel %vm326, %v308, 0
  %v409 = vsel %vm326, %v309, 0
  %v412 = vsel %vm326, %v310, 0
  %v415 = vsel %vm326, %v311, 0
  %v418 = vsel %vm326, %v312, 0
  %v421 = vsel %vm326, %v313, 0
  %423 = vmatpush.msra.mxu0 0.0
  %424 = vmatpush.msra.mxu0 0.0
  %425 = vmatpush.msra.mxu0 0.0
  %426 = vmatpush.msra.mxu0 0.0
  %427 = vmatpush.msra.mxu0 0.0
  %428 = vmatpush.msra.mxu0 0.0
  %429 = vmatpush.msra.mxu0 0.0
  %430 = vmatpush.msra.mxu0 0.0
  %431 = vmatpush.msra.mxu0 %v321
  %432 = vmatpush.msra.mxu0 %v320
  %433 = vmatpush.msra.mxu0 %v319
  %434 = vmatpush.msra.mxu0 %v318
  %435 = vmatpush.msra.mxu0 %v317
  %436 = vmatpush.msra.mxu0 %v316
  %437 = vmatpush.msra.mxu0 %v315
  %438 = vmatpush.msra.mxu0 %v314
  %439 = vmatmul.f32.gmra.mxu0 %v328
  %v440 = vpop.f32.mrf.mxu0
  %v441 = vadd.f32 %v324, %v440
  %442 = vmatmul.f32.gmra.mxu0 %v331
  %v443 = vpop.f32.mrf.mxu0
  %v444 = vadd.f32 %v324, %v443
  %445 = vmatmul.f32.gmra.mxu0 %v334
  %v446 = vpop.f32.mrf.mxu0
  %v447 = vadd.f32 %v324, %v446
  %448 = vmatmul.f32.gmra.mxu0 %v337
  %v449 = vpop.f32.mrf.mxu0
  %v450 = vadd.f32 %v324, %v449
  %451 = vmatmul.f32.gmra.mxu0 %v340
  %v452 = vpop.f32.mrf.mxu0
  %v453 = vadd.f32 %v324, %v452
  %454 = vmatmul.f32.gmra.mxu0 %v343
  %v455 = vpop.f32.mrf.mxu0
  %v456 = vadd.f32 %v324, %v455
  %457 = vmatmul.f32.gmra.mxu0 %v346
  %v458 = vpop.f32.mrf.mxu0
  %v459 = vadd.f32 %v324, %v458
  %460 = vmatmul.f32.gmra.mxu0 %v349
  %v461 = vpop.f32.mrf.mxu0
  %v462 = vadd.f32 %v324, %v461
  %463 = vmatmul.f32.gmra.mxu0 %v352
  %v464 = vpop.f32.mrf.mxu0
  %v465 = vadd.f32 %v324, %v464
  %466 = vmatmul.f32.gmra.mxu0 %v355
  %v467 = vpop.f32.mrf.mxu0
  %v468 = vadd.f32 %v324, %v467
  %469 = vmatmul.f32.gmra.mxu0 %v358
  %v470 = vpop.f32.mrf.mxu0
  %v471 = vadd.f32 %v324, %v470
  %472 = vmatmul.f32.gmra.mxu0 %v361
  %v473 = vpop.f32.mrf.mxu0
  %v474 = vadd.f32 %v324, %v473
  %475 = vmatmul.f32.gmra.mxu0 %v364
  %v476 = vpop.f32.mrf.mxu0
  %v477 = vadd.f32 %v324, %v476
  %478 = vmatmul.f32.gmra.mxu0 %v367
  %v479 = vpop.f32.mrf.mxu0
  %v480 = vadd.f32 %v324, %v479
  %481 = vmatmul.f32.gmra.mxu0 %v370
  %v482 = vpop.f32.mrf.mxu0
  %v483 = vadd.f32 %v324, %v482
  %484 = vmatmul.f32.gmra.mxu0 %v373
  %v485 = vpop.f32.mrf.mxu0
  %v486 = vadd.f32 %v324, %v485
  %487 = vmatmul.f32.gmra.mxu0 %v376
  %v488 = vpop.f32.mrf.mxu0
  %v489 = vadd.f32 %v324, %v488
  %490 = vmatmul.f32.gmra.mxu0 %v379
  %v491 = vpop.f32.mrf.mxu0
  %v492 = vadd.f32 %v324, %v491
  %493 = vmatmul.f32.gmra.mxu0 %v382
  %v494 = vpop.f32.mrf.mxu0
  %v495 = vadd.f32 %v324, %v494
  %496 = vmatmul.f32.gmra.mxu0 %v385
  %v497 = vpop.f32.mrf.mxu0
  %v498 = vadd.f32 %v324, %v497
  %499 = vmatmul.f32.gmra.mxu0 %v388
  %v500 = vpop.f32.mrf.mxu0
  %v501 = vadd.f32 %v324, %v500
  %502 = vmatmul.f32.gmra.mxu0 %v391
  %v503 = vpop.f32.mrf.mxu0
  %v504 = vadd.f32 %v324, %v503
  %505 = vmatmul.f32.gmra.mxu0 %v394
  %v506 = vpop.f32.mrf.mxu0
  %v507 = vadd.f32 %v324, %v506
  %508 = vmatmul.f32.gmra.mxu0 %v397
  %v509 = vpop.f32.mrf.mxu0
  %v510 = vadd.f32 %v324, %v509
  %511 = vmatmul.f32.gmra.mxu0 %v400
  %v512 = vpop.f32.mrf.mxu0
  %v513 = vadd.f32 %v324, %v512
  %514 = vmatmul.f32.gmra.mxu0 %v403
  %v515 = vpop.f32.mrf.mxu0
  %v516 = vadd.f32 %v324, %v515
  %517 = vmatmul.f32.gmra.mxu0 %v406
  %v518 = vpop.f32.mrf.mxu0
  %v519 = vadd.f32 %v324, %v518
  %520 = vmatmul.f32.gmra.mxu0 %v409
  %v521 = vpop.f32.mrf.mxu0
  %v522 = vadd.f32 %v324, %v521
  %523 = vmatmul.f32.gmra.mxu0 %v412
  %v524 = vpop.f32.mrf.mxu0
  %v525 = vadd.f32 %v324, %v524
  %526 = vmatmul.f32.gmra.mxu0 %v415
  %v527 = vpop.f32.mrf.mxu0
  %v528 = vadd.f32 %v324, %v527
  %529 = vmatmul.f32.gmra.mxu0 %v418
  %v530 = vpop.f32.mrf.mxu0
  %v531 = vadd.f32 %v324, %v530
  %532 = vmatmul.f32.gmra.mxu0 %v421
  %v533 = vpop.f32.mrf.mxu0
  %v534 = vadd.f32 %v324, %v533
  %535 = vdwg.mxu0
  %v536 = vmax.f32 %v441, 0.0
  %v537 = vmax.f32 %v444, 0.0
  %v538 = vmax.f32 %v447, 0.0
  %v539 = vmax.f32 %v450, 0.0
  %v540 = vmax.f32 %v453, 0.0
  %v541 = vmax.f32 %v456, 0.0
  %v542 = vmax.f32 %v459, 0.0
  %v543 = vmax.f32 %v462, 0.0
  %v544 = vmax.f32 %v465, 0.0
  %v545 = vmax.f32 %v468, 0.0
  %v546 = vmax.f32 %v471, 0.0
  %v547 = vmax.f32 %v474, 0.0
  %v548 = vmax.f32 %v477, 0.0
  %v549 = vmax.f32 %v480, 0.0
  %v550 = vmax.f32 %v483, 0.0
  %v551 = vmax.f32 %v486, 0.0
  %v552 = vmax.f32 %v489, 0.0
  %v553 = vmax.f32 %v492, 0.0
  %v554 = vmax.f32 %v495, 0.0
  %v555 = vmax.f32 %v498, 0.0
  %v556 = vmax.f32 %v501, 0.0
  %v557 = vmax.f32 %v504, 0.0
  %v558 = vmax.f32 %v507, 0.0
  %v559 = vmax.f32 %v510, 0.0
  %v560 = vmax.f32 %v513, 0.0
  %v561 = vmax.f32 %v516, 0.0
  %v562 = vmax.f32 %v519, 0.0
  %v563 = vmax.f32 %v522, 0.0
  %v564 = vmax.f32 %v525, 0.0
  %v565 = vmax.f32 %v528, 0.0
  %v566 = vmax.f32 %v531, 0.0
  %v567 = vmax.f32 %v534, 0.0
  %v568 = vld [vmem:[%s5] sm:$0xff]
  %v569 = vld [vmem:[%s5 + $0x8] sm:$0xff]
  %v570 = vld [vmem:[%s5 + $0x10] sm:$0xff]
  %v571 = vld [vmem:[%s5 + $0x18] sm:$0xff]
  %v572 = vld [vmem:[%s6] sm:$0x1]
  %v574 = vperm.slane %v572, 0
  %v577 = vsel %vm72, %v536, 0
  %v580 = vsel %vm72, %v537, 0
  %v583 = vsel %vm72, %v538, 0
  %v586 = vsel %vm72, %v539, 0
  %v589 = vsel %vm72, %v540, 0
  %v592 = vsel %vm72, %v541, 0
  %v595 = vsel %vm72, %v542, 0
  %v598 = vsel %vm72, %v543, 0
  %v601 = vsel %vm72, %v544, 0
  %v604 = vsel %vm72, %v545, 0
  %v607 = vsel %vm72, %v546, 0
  %v610 = vsel %vm72, %v547, 0
  %v613 = vsel %vm72, %v548, 0
  %v616 = vsel %vm72, %v549, 0
  %v619 = vsel %vm72, %v550, 0
  %v622 = vsel %vm72, %v551, 0
  %v625 = vsel %vm72, %v552, 0
  %v628 = vsel %vm72, %v553, 0
  %v631 = vsel %vm72, %v554, 0
  %v634 = vsel %vm72, %v555, 0
  %v637 = vsel %vm72, %v556, 0
  %v640 = vsel %vm72, %v557, 0
  %v643 = vsel %vm72, %v558, 0
  %v646 = vsel %vm72, %v559, 0
  %v649 = vsel %vm72, %v560, 0
  %v652 = vsel %vm72, %v561, 0
  %v655 = vsel %vm72, %v562, 0
  %v658 = vsel %vm72, %v563, 0
  %v661 = vsel %vm72, %v564, 0
  %v664 = vsel %vm72, %v565, 0
  %v667 = vsel %vm72, %v566, 0
  %v670 = vsel %vm72, %v567, 0
  %672 = vmatpush.msra.mxu0 0.0
  %673 = vmatpush.msra.mxu0 0.0
  %674 = vmatpush.msra.mxu0 0.0
  %675 = vmatpush.msra.mxu0 0.0
  %676 = vmatpush.msra.mxu0 0.0
  %677 = vmatpush.msra.mxu0 0.0
  %678 = vmatpush.msra.mxu0 0.0
  %679 = vmatpush.msra.mxu0 0.0
  %680 = vmatpush.msra.mxu0 0.0
  %681 = vmatpush.msra.mxu0 0.0
  %682 = vmatpush.msra.mxu0 0.0
  %683 = vmatpush.msra.mxu0 0.0
  %684 = vmatpush.msra.mxu0 %v571
  %685 = vmatpush.msra.mxu0 %v570
  %686 = vmatpush.msra.mxu0 %v569
  %687 = vmatpush.msra.mxu0 %v568
  %688 = vmatmul.f32.gmra.mxu0 %v577
  %v689 = vpop.f32.mrf.mxu0
  %v690 = vadd.f32 %v574, %v689
  %691 = vmatmul.f32.gmra.mxu0 %v580
  %v692 = vpop.f32.mrf.mxu0
  %v693 = vadd.f32 %v574, %v692
  %694 = vmatmul.f32.gmra.mxu0 %v583
  %v695 = vpop.f32.mrf.mxu0
  %v696 = vadd.f32 %v574, %v695
  %697 = vmatmul.f32.gmra.mxu0 %v586
  %v698 = vpop.f32.mrf.mxu0
  %v699 = vadd.f32 %v574, %v698
  %700 = vmatmul.f32.gmra.mxu0 %v589
  %v701 = vpop.f32.mrf.mxu0
  %v702 = vadd.f32 %v574, %v701
  %703 = vmatmul.f32.gmra.mxu0 %v592
  %v704 = vpop.f32.mrf.mxu0
  %v705 = vadd.f32 %v574, %v704
  %706 = vmatmul.f32.gmra.mxu0 %v595
  %v707 = vpop.f32.mrf.mxu0
  %v708 = vadd.f32 %v574, %v707
  %709 = vmatmul.f32.gmra.mxu0 %v598
  %v710 = vpop.f32.mrf.mxu0
  %v711 = vadd.f32 %v574, %v710
  %712 = vmatmul.f32.gmra.mxu0 %v601
  %v713 = vpop.f32.mrf.mxu0
  %v714 = vadd.f32 %v574, %v713
  %715 = vmatmul.f32.gmra.mxu0 %v604
  %v716 = vpop.f32.mrf.mxu0
  %v717 = vadd.f32 %v574, %v716
  %718 = vmatmul.f32.gmra.mxu0 %v607
  %v719 = vpop.f32.mrf.mxu0
  %v720 = vadd.f32 %v574, %v719
  %721 = vmatmul.f32.gmra.mxu0 %v610
  %v722 = vpop.f32.mrf.mxu0
  %v723 = vadd.f32 %v574, %v722
  %724 = vmatmul.f32.gmra.mxu0 %v613
  %v725 = vpop.f32.mrf.mxu0
  %v726 = vadd.f32 %v574, %v725
  %727 = vmatmul.f32.gmra.mxu0 %v616
  %v728 = vpop.f32.mrf.mxu0
  %v729 = vadd.f32 %v574, %v728
  %730 = vmatmul.f32.gmra.mxu0 %v619
  %v731 = vpop.f32.mrf.mxu0
  %v732 = vadd.f32 %v574, %v731
  %733 = vmatmul.f32.gmra.mxu0 %v622
  %v734 = vpop.f32.mrf.mxu0
  %v735 = vadd.f32 %v574, %v734
  %736 = vmatmul.f32.gmra.mxu0 %v625
  %v737 = vpop.f32.mrf.mxu0
  %v738 = vadd.f32 %v574, %v737
  %739 = vmatmul.f32.gmra.mxu0 %v628
  %v740 = vpop.f32.mrf.mxu0
  %v741 = vadd.f32 %v574, %v740
  %742 = vmatmul.f32.gmra.mxu0 %v631
  %v743 = vpop.f32.mrf.mxu0
  %v744 = vadd.f32 %v574, %v743
  %745 = vmatmul.f32.gmra.mxu0 %v634
  %v746 = vpop.f32.mrf.mxu0
  %v747 = vadd.f32 %v574, %v746
  %748 = vmatmul.f32.gmra.mxu0 %v637
  %v749 = vpop.f32.mrf.mxu0
  %v750 = vadd.f32 %v574, %v749
  %751 = vmatmul.f32.gmra.mxu0 %v640
  %v752 = vpop.f32.mrf.mxu0
  %v753 = vadd.f32 %v574, %v752
  %754 = vmatmul.f32.gmra.mxu0 %v643
  %v755 = vpop.f32.mrf.mxu0
  %v756 = vadd.f32 %v574, %v755
  %757 = vmatmul.f32.gmra.mxu0 %v646
  %v758 = vpop.f32.mrf.mxu0
  %v759 = vadd.f32 %v574, %v758
  %760 = vmatmul.f32.gmra.mxu0 %v649
  %v761 = vpop.f32.mrf.mxu0
  %v762 = vadd.f32 %v574, %v761
  %763 = vmatmul.f32.gmra.mxu0 %v652
  %v764 = vpop.f32.mrf.mxu0
  %v765 = vadd.f32 %v574, %v764
  %766 = vmatmul.f32.gmra.mxu0 %v655
  %v767 = vpop.f32.mrf.mxu0
  %v768 = vadd.f32 %v574, %v767
  %769 = vmatmul.f32.gmra.mxu0 %v658
  %v770 = vpop.f32.mrf.mxu0
  %v771 = vadd.f32 %v574, %v770
  %772 = vmatmul.f32.gmra.mxu0 %v661
  %v773 = vpop.f32.mrf.mxu0
  %v774 = vadd.f32 %v574, %v773
  %775 = vmatmul.f32.gmra.mxu0 %v664
  %v776 = vpop.f32.mrf.mxu0
  %v777 = vadd.f32 %v574, %v776
  %778 = vmatmul.f32.gmra.mxu0 %v667
  %v779 = vpop.f32.mrf.mxu0
  %v780 = vadd.f32 %v574, %v779
  %781 = vmatmul.f32.gmra.mxu0 %v670
  %v782 = vpop.f32.mrf.mxu0
  %v783 = vadd.f32 %v574, %v782
  %784 = vdwg.mxu0
  %v785 = vmax.f32 %v690, 0.0
  %v786 = vmax.f32 %v693, 0.0
  %v787 = vmax.f32 %v696, 0.0
  %v788 = vmax.f32 %v699, 0.0
  %v789 = vmax.f32 %v702, 0.0
  %v790 = vmax.f32 %v705, 0.0
  %v791 = vmax.f32 %v708, 0.0
  %v792 = vmax.f32 %v711, 0.0
  %v793 = vmax.f32 %v714, 0.0
  %v794 = vmax.f32 %v717, 0.0
  %v795 = vmax.f32 %v720, 0.0
  %v796 = vmax.f32 %v723, 0.0
  %v797 = vmax.f32 %v726, 0.0
  %v798 = vmax.f32 %v729, 0.0
  %v799 = vmax.f32 %v732, 0.0
  %v800 = vmax.f32 %v735, 0.0
  %v801 = vmax.f32 %v738, 0.0
  %v802 = vmax.f32 %v741, 0.0
  %v803 = vmax.f32 %v744, 0.0
  %v804 = vmax.f32 %v747, 0.0
  %v805 = vmax.f32 %v750, 0.0
  %v806 = vmax.f32 %v753, 0.0
  %v807 = vmax.f32 %v756, 0.0
  %v808 = vmax.f32 %v759, 0.0
  %v809 = vmax.f32 %v762, 0.0
  %v810 = vmax.f32 %v765, 0.0
  %v811 = vmax.f32 %v768, 0.0
  %v812 = vmax.f32 %v771, 0.0
  %v813 = vmax.f32 %v774, 0.0
  %v814 = vmax.f32 %v777, 0.0
  %v815 = vmax.f32 %v780, 0.0
  %v816 = vmax.f32 %v783, 0.0
  %v817 = vld [vmem:[%s7] sm:$0xff]
  %v818 = vld [vmem:[%s7 + $0x8] sm:$0xff]
  %v819 = vld [vmem:[%s8] sm:$0x1]
  %v821 = vperm.slane %v819, 0
  %vm823 = vcmask 130048
  %v825 = vsel %vm823, %v785, 0
  %v828 = vsel %vm823, %v786, 0
  %v831 = vsel %vm823, %v787, 0
  %v834 = vsel %vm823, %v788, 0
  %v837 = vsel %vm823, %v789, 0
  %v840 = vsel %vm823, %v790, 0
  %v843 = vsel %vm823, %v791, 0
  %v846 = vsel %vm823, %v792, 0
  %v849 = vsel %vm823, %v793, 0
  %v852 = vsel %vm823, %v794, 0
  %v855 = vsel %vm823, %v795, 0
  %v858 = vsel %vm823, %v796, 0
  %v861 = vsel %vm823, %v797, 0
  %v864 = vsel %vm823, %v798, 0
  %v867 = vsel %vm823, %v799, 0
  %v870 = vsel %vm823, %v800, 0
  %v873 = vsel %vm823, %v801, 0
  %v876 = vsel %vm823, %v802, 0
  %v879 = vsel %vm823, %v803, 0
  %v882 = vsel %vm823, %v804, 0
  %v885 = vsel %vm823, %v805, 0
  %v888 = vsel %vm823, %v806, 0
  %v891 = vsel %vm823, %v807, 0
  %v894 = vsel %vm823, %v808, 0
  %v897 = vsel %vm823, %v809, 0
  %v900 = vsel %vm823, %v810, 0
  %v903 = vsel %vm823, %v811, 0
  %v906 = vsel %vm823, %v812, 0
  %v909 = vsel %vm823, %v813, 0
  %v912 = vsel %vm823, %v814, 0
  %v915 = vsel %vm823, %v815, 0
  %v918 = vsel %vm823, %v816, 0
  %920 = vmatpush.msra.mxu0 0.0
  %921 = vmatpush.msra.mxu0 0.0
  %922 = vmatpush.msra.mxu0 0.0
  %923 = vmatpush.msra.mxu0 0.0
  %924 = vmatpush.msra.mxu0 0.0
  %925 = vmatpush.msra.mxu0 0.0
  %926 = vmatpush.msra.mxu0 0.0
  %927 = vmatpush.msra.mxu0 0.0
  %928 = vmatpush.msra.mxu0 0.0
  %929 = vmatpush.msra.mxu0 0.0
  %930 = vmatpush.msra.mxu0 0.0
  %931 = vmatpush.msra.mxu0 0.0
  %932 = vmatpush.msra.mxu0 0.0
  %933 = vmatpush.msra.mxu0 0.0
  %934 = vmatpush.msra.mxu0 %v818
  %935 = vmatpush.msra.mxu0 %v817
  %936 = vmatmul.f32.gmra.mxu0 %v825
  %v937 = vpop.f32.mrf.mxu0
  %v938 = vadd.f32 %v821, %v937
  %939 = vmatmul.f32.gmra.mxu0 %v828
  %v940 = vpop.f32.mrf.mxu0
  %v941 = vadd.f32 %v821, %v940
  %942 = vmatmul.f32.gmra.mxu0 %v831
  %v943 = vpop.f32.mrf.mxu0
  %v944 = vadd.f32 %v821, %v943
  %945 = vmatmul.f32.gmra.mxu0 %v834
  %v946 = vpop.f32.mrf.mxu0
  %v947 = vadd.f32 %v821, %v946
  %948 = vmatmul.f32.gmra.mxu0 %v837
  %v949 = vpop.f32.mrf.mxu0
  %v950 = vadd.f32 %v821, %v949
  %951 = vmatmul.f32.gmra.mxu0 %v840
  %v952 = vpop.f32.mrf.mxu0
  %v953 = vadd.f32 %v821, %v952
  %954 = vmatmul.f32.gmra.mxu0 %v843
  %v955 = vpop.f32.mrf.mxu0
  %v956 = vadd.f32 %v821, %v955
  %957 = vmatmul.f32.gmra.mxu0 %v846
  %v958 = vpop.f32.mrf.mxu0
  %v959 = vadd.f32 %v821, %v958
  %960 = vmatmul.f32.gmra.mxu0 %v849
  %v961 = vpop.f32.mrf.mxu0
  %v962 = vadd.f32 %v821, %v961
  %963 = vmatmul.f32.gmra.mxu0 %v852
  %v964 = vpop.f32.mrf.mxu0
  %v965 = vadd.f32 %v821, %v964
  %966 = vmatmul.f32.gmra.mxu0 %v855
  %v967 = vpop.f32.mrf.mxu0
  %v968 = vadd.f32 %v821, %v967
  %969 = vmatmul.f32.gmra.mxu0 %v858
  %v970 = vpop.f32.mrf.mxu0
  %v971 = vadd.f32 %v821, %v970
  %972 = vmatmul.f32.gmra.mxu0 %v861
  %v973 = vpop.f32.mrf.mxu0
  %v974 = vadd.f32 %v821, %v973
  %975 = vmatmul.f32.gmra.mxu0 %v864
  %v976 = vpop.f32.mrf.mxu0
  %v977 = vadd.f32 %v821, %v976
  %978 = vmatmul.f32.gmra.mxu0 %v867
  %v979 = vpop.f32.mrf.mxu0
  %v980 = vadd.f32 %v821, %v979
  %981 = vmatmul.f32.gmra.mxu0 %v870
  %v982 = vpop.f32.mrf.mxu0
  %v983 = vadd.f32 %v821, %v982
  %984 = vmatmul.f32.gmra.mxu0 %v873
  %v985 = vpop.f32.mrf.mxu0
  %v986 = vadd.f32 %v821, %v985
  %987 = vmatmul.f32.gmra.mxu0 %v876
  %v988 = vpop.f32.mrf.mxu0
  %v989 = vadd.f32 %v821, %v988
  %990 = vmatmul.f32.gmra.mxu0 %v879
  %v991 = vpop.f32.mrf.mxu0
  %v992 = vadd.f32 %v821, %v991
  %993 = vmatmul.f32.gmra.mxu0 %v882
  %v994 = vpop.f32.mrf.mxu0
  %v995 = vadd.f32 %v821, %v994
  %996 = vmatmul.f32.gmra.mxu0 %v885
  %v997 = vpop.f32.mrf.mxu0
  %v998 = vadd.f32 %v821, %v997
  %999 = vmatmul.f32.gmra.mxu0 %v888
  %v1000 = vpop.f32.mrf.mxu0
  %v1001 = vadd.f32 %v821, %v1000
  %1002 = vmatmul.f32.gmra.mxu0 %v891
  %v1003 = vpop.f32.mrf.mxu0
  %v1004 = vadd.f32 %v821, %v1003
  %1005 = vmatmul.f32.gmra.mxu0 %v894
  %v1006 = vpop.f32.mrf.mxu0
  %v1007 = vadd.f32 %v821, %v1006
  %1008 = vmatmul.f32.gmra.mxu0 %v897
  %v1009 = vpop.f32.mrf.mxu0
  %v1010 = vadd.f32 %v821, %v1009
  %1011 = vmatmul.f32.gmra.mxu0 %v900
  %v1012 = vpop.f32.mrf.mxu0
  %v1013 = vadd.f32 %v821, %v1012
  %1014 = vmatmul.f32.gmra.mxu0 %v903
  %v1015 = vpop.f32.mrf.mxu0
  %v1016 = vadd.f32 %v821, %v1015
  %1017 = vmatmul.f32.gmra.mxu0 %v906
  %v1018 = vpop.f32.mrf.mxu0
  %v1019 = vadd.f32 %v821, %v1018
  %1020 = vmatmul.f32.gmra.mxu0 %v909
  %v1021 = vpop.f32.mrf.mxu0
  %v1022 = vadd.f32 %v821, %v1021
  %1023 = vmatmul.f32.gmra.mxu0 %v912
  %v1024 = vpop.f32.mrf.mxu0
  %v1025 = vadd.f32 %v821, %v1024
  %1026 = vmatmul.f32.gmra.mxu0 %v915
  %v1027 = vpop.f32.mrf.mxu0
  %v1028 = vadd.f32 %v821, %v1027
  %1029 = vmatmul.f32.gmra.mxu0 %v918
  %v1030 = vpop.f32.mrf.mxu0
  %v1031 = vadd.f32 %v821, %v1030
  %1032 = vdwg.mxu0
  %v1033 = vxor.u32 %v938, 2147483648
  %v1034 = vxor.u32 %v941, 2147483648
  %v1035 = vxor.u32 %v944, 2147483648
  %v1036 = vxor.u32 %v947, 2147483648
  %v1037 = vxor.u32 %v950, 2147483648
  %v1038 = vxor.u32 %v953, 2147483648
  %v1039 = vxor.u32 %v956, 2147483648
  %v1040 = vxor.u32 %v959, 2147483648
  %v1041 = vxor.u32 %v962, 2147483648
  %v1042 = vxor.u32 %v965, 2147483648
  %v1043 = vxor.u32 %v968, 2147483648
  %v1044 = vxor.u32 %v971, 2147483648
  %v1045 = vxor.u32 %v974, 2147483648
  %v1046 = vxor.u32 %v977, 2147483648
  %v1047 = vxor.u32 %v980, 2147483648
  %v1048 = vxor.u32 %v983, 2147483648
  %v1049 = vxor.u32 %v986, 2147483648
  %v1050 = vxor.u32 %v989, 2147483648
  %v1051 = vxor.u32 %v992, 2147483648
  %v1052 = vxor.u32 %v995, 2147483648
  %v1053 = vxor.u32 %v998, 2147483648
  %v1054 = vxor.u32 %v1001, 2147483648
  %v1055 = vxor.u32 %v1004, 2147483648
  %v1056 = vxor.u32 %v1007, 2147483648
  %v1057 = vxor.u32 %v1010, 2147483648
  %v1058 = vxor.u32 %v1013, 2147483648
  %v1059 = vxor.u32 %v1016, 2147483648
  %v1060 = vxor.u32 %v1019, 2147483648
  %v1061 = vxor.u32 %v1022, 2147483648
  %v1062 = vxor.u32 %v1025, 2147483648
  %v1063 = vxor.u32 %v1028, 2147483648
  %v1064 = vxor.u32 %v1031, 2147483648
  %v1065 = vmul.f32 %v1033, 1.442695
  %v1066 = vpow.pop %v1065
  %v1067 = vmul.f32 %v1034, 1.442695
  %v1068 = vpow.pop %v1067
  %v1069 = vmul.f32 %v1035, 1.442695
  %v1070 = vpow.pop %v1069
  %v1071 = vmul.f32 %v1036, 1.442695
  %v1072 = vpow.pop %v1071
  %v1073 = vmul.f32 %v1037, 1.442695
  %v1074 = vpow.pop %v1073
  %v1075 = vmul.f32 %v1038, 1.442695
  %v1076 = vpow.pop %v1075
  %v1077 = vmul.f32 %v1039, 1.442695
  %v1078 = vpow.pop %v1077
  %v1079 = vmul.f32 %v1040, 1.442695
  %v1080 = vpow.pop %v1079
  %v1081 = vmul.f32 %v1041, 1.442695
  %v1082 = vpow.pop %v1081
  %v1083 = vmul.f32 %v1042, 1.442695
  %v1084 = vpow.pop %v1083
  %v1085 = vmul.f32 %v1043, 1.442695
  %v1086 = vpow.pop %v1085
  %v1087 = vmul.f32 %v1044, 1.442695
  %v1088 = vpow.pop %v1087
  %v1089 = vmul.f32 %v1045, 1.442695
  %v1090 = vpow.pop %v1089
  %v1091 = vmul.f32 %v1046, 1.442695
  %v1092 = vpow.pop %v1091
  %v1093 = vmul.f32 %v1047, 1.442695
  %v1094 = vpow.pop %v1093
  %v1095 = vmul.f32 %v1048, 1.442695
  %v1096 = vpow.pop %v1095
  %v1097 = vmul.f32 %v1049, 1.442695
  %v1098 = vpow.pop %v1097
  %v1099 = vmul.f32 %v1050, 1.442695
  %v1100 = vpow.pop %v1099
  %v1101 = vmul.f32 %v1051, 1.442695
  %v1102 = vpow.pop %v1101
  %v1103 = vmul.f32 %v1052, 1.442695
  %v1104 = vpow.pop %v1103
  %v1105 = vmul.f32 %v1053, 1.442695
  %v1106 = vpow.pop %v1105
  %v1107 = vmul.f32 %v1054, 1.442695
  %v1108 = vpow.pop %v1107
  %v1109 = vmul.f32 %v1055, 1.442695
  %v1110 = vpow.pop %v1109
  %v1111 = vmul.f32 %v1056, 1.442695
  %v1112 = vpow.pop %v1111
  %v1113 = vmul.f32 %v1057, 1.442695
  %v1114 = vpow.pop %v1113
  %v1115 = vmul.f32 %v1058, 1.442695
  %v1116 = vpow.pop %v1115
  %v1117 = vmul.f32 %v1059, 1.442695
  %v1118 = vpow.pop %v1117
  %v1119 = vmul.f32 %v1060, 1.442695
  %v1120 = vpow.pop %v1119
  %v1121 = vmul.f32 %v1061, 1.442695
  %v1122 = vpow.pop %v1121
  %v1123 = vmul.f32 %v1062, 1.442695
  %v1124 = vpow.pop %v1123
  %v1125 = vmul.f32 %v1063, 1.442695
  %v1126 = vpow.pop %v1125
  %v1127 = vmul.f32 %v1064, 1.442695
  %v1128 = vpow.pop %v1127
  %v1129 = vadd.f32 %v1066, 1.0
  %v1130 = vadd.f32 %v1068, 1.0
  %v1131 = vadd.f32 %v1070, 1.0
  %v1132 = vadd.f32 %v1072, 1.0
  %v1133 = vadd.f32 %v1074, 1.0
  %v1134 = vadd.f32 %v1076, 1.0
  %v1135 = vadd.f32 %v1078, 1.0
  %v1136 = vadd.f32 %v1080, 1.0
  %v1137 = vadd.f32 %v1082, 1.0
  %v1138 = vadd.f32 %v1084, 1.0
  %v1139 = vadd.f32 %v1086, 1.0
  %v1140 = vadd.f32 %v1088, 1.0
  %v1141 = vadd.f32 %v1090, 1.0
  %v1142 = vadd.f32 %v1092, 1.0
  %v1143 = vadd.f32 %v1094, 1.0
  %v1144 = vadd.f32 %v1096, 1.0
  %v1145 = vadd.f32 %v1098, 1.0
  %v1146 = vadd.f32 %v1100, 1.0
  %v1147 = vadd.f32 %v1102, 1.0
  %v1148 = vadd.f32 %v1104, 1.0
  %v1149 = vadd.f32 %v1106, 1.0
  %v1150 = vadd.f32 %v1108, 1.0
  %v1151 = vadd.f32 %v1110, 1.0
  %v1152 = vadd.f32 %v1112, 1.0
  %v1153 = vadd.f32 %v1114, 1.0
  %v1154 = vadd.f32 %v1116, 1.0
  %v1155 = vadd.f32 %v1118, 1.0
  %v1156 = vadd.f32 %v1120, 1.0
  %v1157 = vadd.f32 %v1122, 1.0
  %v1158 = vadd.f32 %v1124, 1.0
  %v1159 = vadd.f32 %v1126, 1.0
  %v1160 = vadd.f32 %v1128, 1.0
  %v1161 = vrcp.pop %v1129
  %v1162 = vmul.f32 %v1129, %v1161
  %v1163 = vsub.f32 1.0, %v1162
  %v1164 = vmul.f32 %v1161, %v1163
  %v1165 = vadd.f32 %v1161, %v1164
  %vm1166 = vweird.f32 %v1129
  %vm1167 = vweird.f32 %v1161
  %vm1168 = vmor %vm1166, %vm1167
  %v1169 = vsel %vm1168, %v1161, %v1165
  %v1170 = vand.u32 2147483647, %v1129
  %vm1171 = vcmp.eq.f32.partialorder %v1170, 8.507059e+37
  %v1172 = vand.u32 %v1129, 2147483648
  %v1173 = vor.u32 1.1754944e-38, %v1172
  %v1174 = vsel %vm1171, %v1173, %v1169
  %v1175 = vmul.f32 1.0, %v1174
  %v1176 = vrcp.pop %v1130
  %v1177 = vmul.f32 %v1130, %v1176
  %v1178 = vsub.f32 1.0, %v1177
  %v1179 = vmul.f32 %v1176, %v1178
  %v1180 = vadd.f32 %v1176, %v1179
  %vm1181 = vweird.f32 %v1130
  %vm1182 = vweird.f32 %v1176
  %vm1183 = vmor %vm1181, %vm1182
  %v1184 = vsel %vm1183, %v1176, %v1180
  %v1185 = vand.u32 2147483647, %v1130
  %vm1186 = vcmp.eq.f32.partialorder %v1185, 8.507059e+37
  %v1187 = vand.u32 %v1130, 2147483648
  %v1188 = vor.u32 1.1754944e-38, %v1187
  %v1189 = vsel %vm1186, %v1188, %v1184
  %v1190 = vmul.f32 1.0, %v1189
  %v1191 = vrcp.pop %v1131
  %v1192 = vmul.f32 %v1131, %v1191
  %v1193 = vsub.f32 1.0, %v1192
  %v1194 = vmul.f32 %v1191, %v1193
  %v1195 = vadd.f32 %v1191, %v1194
  %vm1196 = vweird.f32 %v1131
  %vm1197 = vweird.f32 %v1191
  %vm1198 = vmor %vm1196, %vm1197
  %v1199 = vsel %vm1198, %v1191, %v1195
  %v1200 = vand.u32 2147483647, %v1131
  %vm1201 = vcmp.eq.f32.partialorder %v1200, 8.507059e+37
  %v1202 = vand.u32 %v1131, 2147483648
  %v1203 = vor.u32 1.1754944e-38, %v1202
  %v1204 = vsel %vm1201, %v1203, %v1199
  %v1205 = vmul.f32 1.0, %v1204
  %v1206 = vrcp.pop %v1132
  %v1207 = vmul.f32 %v1132, %v1206
  %v1208 = vsub.f32 1.0, %v1207
  %v1209 = vmul.f32 %v1206, %v1208
  %v1210 = vadd.f32 %v1206, %v1209
  %vm1211 = vweird.f32 %v1132
  %vm1212 = vweird.f32 %v1206
  %vm1213 = vmor %vm1211, %vm1212
  %v1214 = vsel %vm1213, %v1206, %v1210
  %v1215 = vand.u32 2147483647, %v1132
  %vm1216 = vcmp.eq.f32.partialorder %v1215, 8.507059e+37
  %v1217 = vand.u32 %v1132, 2147483648
  %v1218 = vor.u32 1.1754944e-38, %v1217
  %v1219 = vsel %vm1216, %v1218, %v1214
  %v1220 = vmul.f32 1.0, %v1219
  %v1221 = vrcp.pop %v1133
  %v1222 = vmul.f32 %v1133, %v1221
  %v1223 = vsub.f32 1.0, %v1222
  %v1224 = vmul.f32 %v1221, %v1223
  %v1225 = vadd.f32 %v1221, %v1224
  %vm1226 = vweird.f32 %v1133
  %vm1227 = vweird.f32 %v1221
  %vm1228 = vmor %vm1226, %vm1227
  %v1229 = vsel %vm1228, %v1221, %v1225
  %v1230 = vand.u32 2147483647, %v1133
  %vm1231 = vcmp.eq.f32.partialorder %v1230, 8.507059e+37
  %v1232 = vand.u32 %v1133, 2147483648
  %v1233 = vor.u32 1.1754944e-38, %v1232
  %v1234 = vsel %vm1231, %v1233, %v1229
  %v1235 = vmul.f32 1.0, %v1234
  %v1236 = vrcp.pop %v1134
  %v1237 = vmul.f32 %v1134, %v1236
  %v1238 = vsub.f32 1.0, %v1237
  %v1239 = vmul.f32 %v1236, %v1238
  %v1240 = vadd.f32 %v1236, %v1239
  %vm1241 = vweird.f32 %v1134
  %vm1242 = vweird.f32 %v1236
  %vm1243 = vmor %vm1241, %vm1242
  %v1244 = vsel %vm1243, %v1236, %v1240
  %v1245 = vand.u32 2147483647, %v1134
  %vm1246 = vcmp.eq.f32.partialorder %v1245, 8.507059e+37
  %v1247 = vand.u32 %v1134, 2147483648
  %v1248 = vor.u32 1.1754944e-38, %v1247
  %v1249 = vsel %vm1246, %v1248, %v1244
  %v1250 = vmul.f32 1.0, %v1249
  %v1251 = vrcp.pop %v1135
  %v1252 = vmul.f32 %v1135, %v1251
  %v1253 = vsub.f32 1.0, %v1252
  %v1254 = vmul.f32 %v1251, %v1253
  %v1255 = vadd.f32 %v1251, %v1254
  %vm1256 = vweird.f32 %v1135
  %vm1257 = vweird.f32 %v1251
  %vm1258 = vmor %vm1256, %vm1257
  %v1259 = vsel %vm1258, %v1251, %v1255
  %v1260 = vand.u32 2147483647, %v1135
  %vm1261 = vcmp.eq.f32.partialorder %v1260, 8.507059e+37
  %v1262 = vand.u32 %v1135, 2147483648
  %v1263 = vor.u32 1.1754944e-38, %v1262
  %v1264 = vsel %vm1261, %v1263, %v1259
  %v1265 = vmul.f32 1.0, %v1264
  %v1266 = vrcp.pop %v1136
  %v1267 = vmul.f32 %v1136, %v1266
  %v1268 = vsub.f32 1.0, %v1267
  %v1269 = vmul.f32 %v1266, %v1268
  %v1270 = vadd.f32 %v1266, %v1269
  %vm1271 = vweird.f32 %v1136
  %vm1272 = vweird.f32 %v1266
  %vm1273 = vmor %vm1271, %vm1272
  %v1274 = vsel %vm1273, %v1266, %v1270
  %v1275 = vand.u32 2147483647, %v1136
  %vm1276 = vcmp.eq.f32.partialorder %v1275, 8.507059e+37
  %v1277 = vand.u32 %v1136, 2147483648
  %v1278 = vor.u32 1.1754944e-38, %v1277
  %v1279 = vsel %vm1276, %v1278, %v1274
  %v1280 = vmul.f32 1.0, %v1279
  %v1281 = vrcp.pop %v1137
  %v1282 = vmul.f32 %v1137, %v1281
  %v1283 = vsub.f32 1.0, %v1282
  %v1284 = vmul.f32 %v1281, %v1283
  %v1285 = vadd.f32 %v1281, %v1284
  %vm1286 = vweird.f32 %v1137
  %vm1287 = vweird.f32 %v1281
  %vm1288 = vmor %vm1286, %vm1287
  %v1289 = vsel %vm1288, %v1281, %v1285
  %v1290 = vand.u32 2147483647, %v1137
  %vm1291 = vcmp.eq.f32.partialorder %v1290, 8.507059e+37
  %v1292 = vand.u32 %v1137, 2147483648
  %v1293 = vor.u32 1.1754944e-38, %v1292
  %v1294 = vsel %vm1291, %v1293, %v1289
  %v1295 = vmul.f32 1.0, %v1294
  %v1296 = vrcp.pop %v1138
  %v1297 = vmul.f32 %v1138, %v1296
  %v1298 = vsub.f32 1.0, %v1297
  %v1299 = vmul.f32 %v1296, %v1298
  %v1300 = vadd.f32 %v1296, %v1299
  %vm1301 = vweird.f32 %v1138
  %vm1302 = vweird.f32 %v1296
  %vm1303 = vmor %vm1301, %vm1302
  %v1304 = vsel %vm1303, %v1296, %v1300
  %v1305 = vand.u32 2147483647, %v1138
  %vm1306 = vcmp.eq.f32.partialorder %v1305, 8.507059e+37
  %v1307 = vand.u32 %v1138, 2147483648
  %v1308 = vor.u32 1.1754944e-38, %v1307
  %v1309 = vsel %vm1306, %v1308, %v1304
  %v1310 = vmul.f32 1.0, %v1309
  %v1311 = vrcp.pop %v1139
  %v1312 = vmul.f32 %v1139, %v1311
  %v1313 = vsub.f32 1.0, %v1312
  %v1314 = vmul.f32 %v1311, %v1313
  %v1315 = vadd.f32 %v1311, %v1314
  %vm1316 = vweird.f32 %v1139
  %vm1317 = vweird.f32 %v1311
  %vm1318 = vmor %vm1316, %vm1317
  %v1319 = vsel %vm1318, %v1311, %v1315
  %v1320 = vand.u32 2147483647, %v1139
  %vm1321 = vcmp.eq.f32.partialorder %v1320, 8.507059e+37
  %v1322 = vand.u32 %v1139, 2147483648
  %v1323 = vor.u32 1.1754944e-38, %v1322
  %v1324 = vsel %vm1321, %v1323, %v1319
  %v1325 = vmul.f32 1.0, %v1324
  %v1326 = vrcp.pop %v1140
  %v1327 = vmul.f32 %v1140, %v1326
  %v1328 = vsub.f32 1.0, %v1327
  %v1329 = vmul.f32 %v1326, %v1328
  %v1330 = vadd.f32 %v1326, %v1329
  %vm1331 = vweird.f32 %v1140
  %vm1332 = vweird.f32 %v1326
  %vm1333 = vmor %vm1331, %vm1332
  %v1334 = vsel %vm1333, %v1326, %v1330
  %v1335 = vand.u32 2147483647, %v1140
  %vm1336 = vcmp.eq.f32.partialorder %v1335, 8.507059e+37
  %v1337 = vand.u32 %v1140, 2147483648
  %v1338 = vor.u32 1.1754944e-38, %v1337
  %v1339 = vsel %vm1336, %v1338, %v1334
  %v1340 = vmul.f32 1.0, %v1339
  %v1341 = vrcp.pop %v1141
  %v1342 = vmul.f32 %v1141, %v1341
  %v1343 = vsub.f32 1.0, %v1342
  %v1344 = vmul.f32 %v1341, %v1343
  %v1345 = vadd.f32 %v1341, %v1344
  %vm1346 = vweird.f32 %v1141
  %vm1347 = vweird.f32 %v1341
  %vm1348 = vmor %vm1346, %vm1347
  %v1349 = vsel %vm1348, %v1341, %v1345
  %v1350 = vand.u32 2147483647, %v1141
  %vm1351 = vcmp.eq.f32.partialorder %v1350, 8.507059e+37
  %v1352 = vand.u32 %v1141, 2147483648
  %v1353 = vor.u32 1.1754944e-38, %v1352
  %v1354 = vsel %vm1351, %v1353, %v1349
  %v1355 = vmul.f32 1.0, %v1354
  %v1356 = vrcp.pop %v1142
  %v1357 = vmul.f32 %v1142, %v1356
  %v1358 = vsub.f32 1.0, %v1357
  %v1359 = vmul.f32 %v1356, %v1358
  %v1360 = vadd.f32 %v1356, %v1359
  %vm1361 = vweird.f32 %v1142
  %vm1362 = vweird.f32 %v1356
  %vm1363 = vmor %vm1361, %vm1362
  %v1364 = vsel %vm1363, %v1356, %v1360
  %v1365 = vand.u32 2147483647, %v1142
  %vm1366 = vcmp.eq.f32.partialorder %v1365, 8.507059e+37
  %v1367 = vand.u32 %v1142, 2147483648
  %v1368 = vor.u32 1.1754944e-38, %v1367
  %v1369 = vsel %vm1366, %v1368, %v1364
  %v1370 = vmul.f32 1.0, %v1369
  %v1371 = vrcp.pop %v1143
  %v1372 = vmul.f32 %v1143, %v1371
  %v1373 = vsub.f32 1.0, %v1372
  %v1374 = vmul.f32 %v1371, %v1373
  %v1375 = vadd.f32 %v1371, %v1374
  %vm1376 = vweird.f32 %v1143
  %vm1377 = vweird.f32 %v1371
  %vm1378 = vmor %vm1376, %vm1377
  %v1379 = vsel %vm1378, %v1371, %v1375
  %v1380 = vand.u32 2147483647, %v1143
  %vm1381 = vcmp.eq.f32.partialorder %v1380, 8.507059e+37
  %v1382 = vand.u32 %v1143, 2147483648
  %v1383 = vor.u32 1.1754944e-38, %v1382
  %v1384 = vsel %vm1381, %v1383, %v1379
  %v1385 = vmul.f32 1.0, %v1384
  %v1386 = vrcp.pop %v1144
  %v1387 = vmul.f32 %v1144, %v1386
  %v1388 = vsub.f32 1.0, %v1387
  %v1389 = vmul.f32 %v1386, %v1388
  %v1390 = vadd.f32 %v1386, %v1389
  %vm1391 = vweird.f32 %v1144
  %vm1392 = vweird.f32 %v1386
  %vm1393 = vmor %vm1391, %vm1392
  %v1394 = vsel %vm1393, %v1386, %v1390
  %v1395 = vand.u32 2147483647, %v1144
  %vm1396 = vcmp.eq.f32.partialorder %v1395, 8.507059e+37
  %v1397 = vand.u32 %v1144, 2147483648
  %v1398 = vor.u32 1.1754944e-38, %v1397
  %v1399 = vsel %vm1396, %v1398, %v1394
  %v1400 = vmul.f32 1.0, %v1399
  %v1401 = vrcp.pop %v1145
  %v1402 = vmul.f32 %v1145, %v1401
  %v1403 = vsub.f32 1.0, %v1402
  %v1404 = vmul.f32 %v1401, %v1403
  %v1405 = vadd.f32 %v1401, %v1404
  %vm1406 = vweird.f32 %v1145
  %vm1407 = vweird.f32 %v1401
  %vm1408 = vmor %vm1406, %vm1407
  %v1409 = vsel %vm1408, %v1401, %v1405
  %v1410 = vand.u32 2147483647, %v1145
  %vm1411 = vcmp.eq.f32.partialorder %v1410, 8.507059e+37
  %v1412 = vand.u32 %v1145, 2147483648
  %v1413 = vor.u32 1.1754944e-38, %v1412
  %v1414 = vsel %vm1411, %v1413, %v1409
  %v1415 = vmul.f32 1.0, %v1414
  %v1416 = vrcp.pop %v1146
  %v1417 = vmul.f32 %v1146, %v1416
  %v1418 = vsub.f32 1.0, %v1417
  %v1419 = vmul.f32 %v1416, %v1418
  %v1420 = vadd.f32 %v1416, %v1419
  %vm1421 = vweird.f32 %v1146
  %vm1422 = vweird.f32 %v1416
  %vm1423 = vmor %vm1421, %vm1422
  %v1424 = vsel %vm1423, %v1416, %v1420
  %v1425 = vand.u32 2147483647, %v1146
  %vm1426 = vcmp.eq.f32.partialorder %v1425, 8.507059e+37
  %v1427 = vand.u32 %v1146, 2147483648
  %v1428 = vor.u32 1.1754944e-38, %v1427
  %v1429 = vsel %vm1426, %v1428, %v1424
  %v1430 = vmul.f32 1.0, %v1429
  %v1431 = vrcp.pop %v1147
  %v1432 = vmul.f32 %v1147, %v1431
  %v1433 = vsub.f32 1.0, %v1432
  %v1434 = vmul.f32 %v1431, %v1433
  %v1435 = vadd.f32 %v1431, %v1434
  %vm1436 = vweird.f32 %v1147
  %vm1437 = vweird.f32 %v1431
  %vm1438 = vmor %vm1436, %vm1437
  %v1439 = vsel %vm1438, %v1431, %v1435
  %v1440 = vand.u32 2147483647, %v1147
  %vm1441 = vcmp.eq.f32.partialorder %v1440, 8.507059e+37
  %v1442 = vand.u32 %v1147, 2147483648
  %v1443 = vor.u32 1.1754944e-38, %v1442
  %v1444 = vsel %vm1441, %v1443, %v1439
  %v1445 = vmul.f32 1.0, %v1444
  %v1446 = vrcp.pop %v1148
  %v1447 = vmul.f32 %v1148, %v1446
  %v1448 = vsub.f32 1.0, %v1447
  %v1449 = vmul.f32 %v1446, %v1448
  %v1450 = vadd.f32 %v1446, %v1449
  %vm1451 = vweird.f32 %v1148
  %vm1452 = vweird.f32 %v1446
  %vm1453 = vmor %vm1451, %vm1452
  %v1454 = vsel %vm1453, %v1446, %v1450
  %v1455 = vand.u32 2147483647, %v1148
  %vm1456 = vcmp.eq.f32.partialorder %v1455, 8.507059e+37
  %v1457 = vand.u32 %v1148, 2147483648
  %v1458 = vor.u32 1.1754944e-38, %v1457
  %v1459 = vsel %vm1456, %v1458, %v1454
  %v1460 = vmul.f32 1.0, %v1459
  %v1461 = vrcp.pop %v1149
  %v1462 = vmul.f32 %v1149, %v1461
  %v1463 = vsub.f32 1.0, %v1462
  %v1464 = vmul.f32 %v1461, %v1463
  %v1465 = vadd.f32 %v1461, %v1464
  %vm1466 = vweird.f32 %v1149
  %vm1467 = vweird.f32 %v1461
  %vm1468 = vmor %vm1466, %vm1467
  %v1469 = vsel %vm1468, %v1461, %v1465
  %v1470 = vand.u32 2147483647, %v1149
  %vm1471 = vcmp.eq.f32.partialorder %v1470, 8.507059e+37
  %v1472 = vand.u32 %v1149, 2147483648
  %v1473 = vor.u32 1.1754944e-38, %v1472
  %v1474 = vsel %vm1471, %v1473, %v1469
  %v1475 = vmul.f32 1.0, %v1474
  %v1476 = vrcp.pop %v1150
  %v1477 = vmul.f32 %v1150, %v1476
  %v1478 = vsub.f32 1.0, %v1477
  %v1479 = vmul.f32 %v1476, %v1478
  %v1480 = vadd.f32 %v1476, %v1479
  %vm1481 = vweird.f32 %v1150
  %vm1482 = vweird.f32 %v1476
  %vm1483 = vmor %vm1481, %vm1482
  %v1484 = vsel %vm1483, %v1476, %v1480
  %v1485 = vand.u32 2147483647, %v1150
  %vm1486 = vcmp.eq.f32.partialorder %v1485, 8.507059e+37
  %v1487 = vand.u32 %v1150, 2147483648
  %v1488 = vor.u32 1.1754944e-38, %v1487
  %v1489 = vsel %vm1486, %v1488, %v1484
  %v1490 = vmul.f32 1.0, %v1489
  %v1491 = vrcp.pop %v1151
  %v1492 = vmul.f32 %v1151, %v1491
  %v1493 = vsub.f32 1.0, %v1492
  %v1494 = vmul.f32 %v1491, %v1493
  %v1495 = vadd.f32 %v1491, %v1494
  %vm1496 = vweird.f32 %v1151
  %vm1497 = vweird.f32 %v1491
  %vm1498 = vmor %vm1496, %vm1497
  %v1499 = vsel %vm1498, %v1491, %v1495
  %v1500 = vand.u32 2147483647, %v1151
  %vm1501 = vcmp.eq.f32.partialorder %v1500, 8.507059e+37
  %v1502 = vand.u32 %v1151, 2147483648
  %v1503 = vor.u32 1.1754944e-38, %v1502
  %v1504 = vsel %vm1501, %v1503, %v1499
  %v1505 = vmul.f32 1.0, %v1504
  %v1506 = vrcp.pop %v1152
  %v1507 = vmul.f32 %v1152, %v1506
  %v1508 = vsub.f32 1.0, %v1507
  %v1509 = vmul.f32 %v1506, %v1508
  %v1510 = vadd.f32 %v1506, %v1509
  %vm1511 = vweird.f32 %v1152
  %vm1512 = vweird.f32 %v1506
  %vm1513 = vmor %vm1511, %vm1512
  %v1514 = vsel %vm1513, %v1506, %v1510
  %v1515 = vand.u32 2147483647, %v1152
  %vm1516 = vcmp.eq.f32.partialorder %v1515, 8.507059e+37
  %v1517 = vand.u32 %v1152, 2147483648
  %v1518 = vor.u32 1.1754944e-38, %v1517
  %v1519 = vsel %vm1516, %v1518, %v1514
  %v1520 = vmul.f32 1.0, %v1519
  %v1521 = vrcp.pop %v1153
  %v1522 = vmul.f32 %v1153, %v1521
  %v1523 = vsub.f32 1.0, %v1522
  %v1524 = vmul.f32 %v1521, %v1523
  %v1525 = vadd.f32 %v1521, %v1524
  %vm1526 = vweird.f32 %v1153
  %vm1527 = vweird.f32 %v1521
  %vm1528 = vmor %vm1526, %vm1527
  %v1529 = vsel %vm1528, %v1521, %v1525
  %v1530 = vand.u32 2147483647, %v1153
  %vm1531 = vcmp.eq.f32.partialorder %v1530, 8.507059e+37
  %v1532 = vand.u32 %v1153, 2147483648
  %v1533 = vor.u32 1.1754944e-38, %v1532
  %v1534 = vsel %vm1531, %v1533, %v1529
  %v1535 = vmul.f32 1.0, %v1534
  %v1536 = vrcp.pop %v1154
  %v1537 = vmul.f32 %v1154, %v1536
  %v1538 = vsub.f32 1.0, %v1537
  %v1539 = vmul.f32 %v1536, %v1538
  %v1540 = vadd.f32 %v1536, %v1539
  %vm1541 = vweird.f32 %v1154
  %vm1542 = vweird.f32 %v1536
  %vm1543 = vmor %vm1541, %vm1542
  %v1544 = vsel %vm1543, %v1536, %v1540
  %v1545 = vand.u32 2147483647, %v1154
  %vm1546 = vcmp.eq.f32.partialorder %v1545, 8.507059e+37
  %v1547 = vand.u32 %v1154, 2147483648
  %v1548 = vor.u32 1.1754944e-38, %v1547
  %v1549 = vsel %vm1546, %v1548, %v1544
  %v1550 = vmul.f32 1.0, %v1549
  %v1551 = vrcp.pop %v1155
  %v1552 = vmul.f32 %v1155, %v1551
  %v1553 = vsub.f32 1.0, %v1552
  %v1554 = vmul.f32 %v1551, %v1553
  %v1555 = vadd.f32 %v1551, %v1554
  %vm1556 = vweird.f32 %v1155
  %vm1557 = vweird.f32 %v1551
  %vm1558 = vmor %vm1556, %vm1557
  %v1559 = vsel %vm1558, %v1551, %v1555
  %v1560 = vand.u32 2147483647, %v1155
  %vm1561 = vcmp.eq.f32.partialorder %v1560, 8.507059e+37
  %v1562 = vand.u32 %v1155, 2147483648
  %v1563 = vor.u32 1.1754944e-38, %v1562
  %v1564 = vsel %vm1561, %v1563, %v1559
  %v1565 = vmul.f32 1.0, %v1564
  %v1566 = vrcp.pop %v1156
  %v1567 = vmul.f32 %v1156, %v1566
  %v1568 = vsub.f32 1.0, %v1567
  %v1569 = vmul.f32 %v1566, %v1568
  %v1570 = vadd.f32 %v1566, %v1569
  %vm1571 = vweird.f32 %v1156
  %vm1572 = vweird.f32 %v1566
  %vm1573 = vmor %vm1571, %vm1572
  %v1574 = vsel %vm1573, %v1566, %v1570
  %v1575 = vand.u32 2147483647, %v1156
  %vm1576 = vcmp.eq.f32.partialorder %v1575, 8.507059e+37
  %v1577 = vand.u32 %v1156, 2147483648
  %v1578 = vor.u32 1.1754944e-38, %v1577
  %v1579 = vsel %vm1576, %v1578, %v1574
  %v1580 = vmul.f32 1.0, %v1579
  %v1581 = vrcp.pop %v1157
  %v1582 = vmul.f32 %v1157, %v1581
  %v1583 = vsub.f32 1.0, %v1582
  %v1584 = vmul.f32 %v1581, %v1583
  %v1585 = vadd.f32 %v1581, %v1584
  %vm1586 = vweird.f32 %v1157
  %vm1587 = vweird.f32 %v1581
  %vm1588 = vmor %vm1586, %vm1587
  %v1589 = vsel %vm1588, %v1581, %v1585
  %v1590 = vand.u32 2147483647, %v1157
  %vm1591 = vcmp.eq.f32.partialorder %v1590, 8.507059e+37
  %v1592 = vand.u32 %v1157, 2147483648
  %v1593 = vor.u32 1.1754944e-38, %v1592
  %v1594 = vsel %vm1591, %v1593, %v1589
  %v1595 = vmul.f32 1.0, %v1594
  %v1596 = vrcp.pop %v1158
  %v1597 = vmul.f32 %v1158, %v1596
  %v1598 = vsub.f32 1.0, %v1597
  %v1599 = vmul.f32 %v1596, %v1598
  %v1600 = vadd.f32 %v1596, %v1599
  %vm1601 = vweird.f32 %v1158
  %vm1602 = vweird.f32 %v1596
  %vm1603 = vmor %vm1601, %vm1602
  %v1604 = vsel %vm1603, %v1596, %v1600
  %v1605 = vand.u32 2147483647, %v1158
  %vm1606 = vcmp.eq.f32.partialorder %v1605, 8.507059e+37
  %v1607 = vand.u32 %v1158, 2147483648
  %v1608 = vor.u32 1.1754944e-38, %v1607
  %v1609 = vsel %vm1606, %v1608, %v1604
  %v1610 = vmul.f32 1.0, %v1609
  %v1611 = vrcp.pop %v1159
  %v1612 = vmul.f32 %v1159, %v1611
  %v1613 = vsub.f32 1.0, %v1612
  %v1614 = vmul.f32 %v1611, %v1613
  %v1615 = vadd.f32 %v1611, %v1614
  %vm1616 = vweird.f32 %v1159
  %vm1617 = vweird.f32 %v1611
  %vm1618 = vmor %vm1616, %vm1617
  %v1619 = vsel %vm1618, %v1611, %v1615
  %v1620 = vand.u32 2147483647, %v1159
  %vm1621 = vcmp.eq.f32.partialorder %v1620, 8.507059e+37
  %v1622 = vand.u32 %v1159, 2147483648
  %v1623 = vor.u32 1.1754944e-38, %v1622
  %v1624 = vsel %vm1621, %v1623, %v1619
  %v1625 = vmul.f32 1.0, %v1624
  %v1626 = vrcp.pop %v1160
  %v1627 = vmul.f32 %v1160, %v1626
  %v1628 = vsub.f32 1.0, %v1627
  %v1629 = vmul.f32 %v1626, %v1628
  %v1630 = vadd.f32 %v1626, %v1629
  %vm1631 = vweird.f32 %v1160
  %vm1632 = vweird.f32 %v1626
  %vm1633 = vmor %vm1631, %vm1632
  %v1634 = vsel %vm1633, %v1626, %v1630
  %v1635 = vand.u32 2147483647, %v1160
  %vm1636 = vcmp.eq.f32.partialorder %v1635, 8.507059e+37
  %v1637 = vand.u32 %v1160, 2147483648
  %v1638 = vor.u32 1.1754944e-38, %v1637
  %v1639 = vsel %vm1636, %v1638, %v1634
  %v1640 = vmul.f32 1.0, %v1639
  %vm1641 = vcmask 31744
  %1642 = vst.msk [vmem:[%s9] sm:$0xff] %vm1641, %v1175
  %1643 = vst.msk [vmem:[%s9 + $0x8] sm:$0xff] %vm1641, %v1190
  %1644 = vst.msk [vmem:[%s9 + $0x10] sm:$0xff] %vm1641, %v1205
  %1645 = vst.msk [vmem:[%s9 + $0x18] sm:$0xff] %vm1641, %v1220
  %1646 = vst.msk [vmem:[%s9 + $0x20] sm:$0xff] %vm1641, %v1235
  %1647 = vst.msk [vmem:[%s9 + $0x28] sm:$0xff] %vm1641, %v1250
  %1648 = vst.msk [vmem:[%s9 + $0x30] sm:$0xff] %vm1641, %v1265
  %1649 = vst.msk [vmem:[%s9 + $0x38] sm:$0xff] %vm1641, %v1280
  %1650 = vst.msk [vmem:[%s9 + $0x40] sm:$0xff] %vm1641, %v1295
  %1651 = vst.msk [vmem:[%s9 + $0x48] sm:$0xff] %vm1641, %v1310
  %1652 = vst.msk [vmem:[%s9 + $0x50] sm:$0xff] %vm1641, %v1325
  %1653 = vst.msk [vmem:[%s9 + $0x58] sm:$0xff] %vm1641, %v1340
  %1654 = vst.msk [vmem:[%s9 + $0x60] sm:$0xff] %vm1641, %v1355
  %1655 = vst.msk [vmem:[%s9 + $0x68] sm:$0xff] %vm1641, %v1370
  %1656 = vst.msk [vmem:[%s9 + $0x70] sm:$0xff] %vm1641, %v1385
  %1657 = vst.msk [vmem:[%s9 + $0x78] sm:$0xff] %vm1641, %v1400
  %1658 = vst.msk [vmem:[%s9 + $0x80] sm:$0xff] %vm1641, %v1415
  %1659 = vst.msk [vmem:[%s9 + $0x88] sm:$0xff] %vm1641, %v1430
  %1660 = vst.msk [vmem:[%s9 + $0x90] sm:$0xff] %vm1641, %v1445
  %1661 = vst.msk [vmem:[%s9 + $0x98] sm:$0xff] %vm1641, %v1460
  %1662 = vst.msk [vmem:[%s9 + $0xa0] sm:$0xff] %vm1641, %v1475
  %1663 = vst.msk [vmem:[%s9 + $0xa8] sm:$0xff] %vm1641, %v1490
  %1664 = vst.msk [vmem:[%s9 + $0xb0] sm:$0xff] %vm1641, %v1505
  %1665 = vst.msk [vmem:[%s9 + $0xb8] sm:$0xff] %vm1641, %v1520
  %1666 = vst.msk [vmem:[%s9 + $0xc0] sm:$0xff] %vm1641, %v1535
  %1667 = vst.msk [vmem:[%s9 + $0xc8] sm:$0xff] %vm1641, %v1550
  %1668 = vst.msk [vmem:[%s9 + $0xd0] sm:$0xff] %vm1641, %v1565
  %1669 = vst.msk [vmem:[%s9 + $0xd8] sm:$0xff] %vm1641, %v1580
  %1670 = vst.msk [vmem:[%s9 + $0xe0] sm:$0xff] %vm1641, %v1595
  %1671 = vst.msk [vmem:[%s9 + $0xe8] sm:$0xff] %vm1641, %v1610
  %1672 = vst.msk [vmem:[%s9 + $0xf0] sm:$0xff] %vm1641, %v1625
  %1673 = vst.msk [vmem:[%s9 + $0xf8] sm:$0xff] %vm1641, %v1640
  // Predicated region
  $region38: #{tpu_custom_call.1} parent=0 // pred_check
    _
  $region39: #{tpu_custom_call.1} parent=0 // pred_check_branch
    %1675 = sbr.rel (0) target = $region41
  $region40: #{tpu_custom_call.1} parent=0 // pred_region
    _
  $region41: #{tpu_custom_call.1} parent=0 // pred_fallthru
    _
  // Predicated region
  $region42: #{tpu_custom_call.1} parent=0 // pred_check
    _
  $region43: #{tpu_custom_call.1} parent=0 // pred_check_branch
    %1677 = sbr.rel (0) target = $region45
  $region44: #{tpu_custom_call.1} parent=0 // pred_region
    _
  $region45: #{tpu_custom_call.1} parent=0 // pred_fallthru
    _

</llo_original>
